<compile_context>
chip_gen: v7x
topology: tpu7x:2x2x1
jax: 0.10.0
libtpu: 0.0.40
codegen_flags: <defaults>
</compile_context>

<pallas_src>
import functools
import math

import jax
import jax.numpy as jnp
from jax import lax
from jax.experimental import pallas as pl
from jax.experimental.pallas import tpu as pltpu

LANE = 128      # MXU contraction (K) alignment
BN_EPS = 1e-5   # PyTorch BatchNorm2d default


# ------------------------------ fused kernel -------------------------------

def _residual_kernel(x_ref, w1_ref, w2_ref, s1_ref, t1_ref, s2_ref, t2_ref,
                     o_ref, *scratch, row_tile):
    """Fused ReLU -> conv3x3(SAME) -> BN -> ReLU -> conv1x1 -> BN -> (+x).

    x_ref : (1, H+2, W+2, C)   halo-padded image (zero halo; relu(0)=0 keeps
                               SAME padding correct), true C channels.
    w1_ref: (9, Kp, Kp)        3x3 taps [tap, in, out], bf16, zero-padded.
    w2_ref: (Kp, C)            1x1 conv [in, out], bf16, K zero-padded.
    s1/t1 : (1, Kp)  s2/t2 : (1, C)   folded BatchNorm scale / shift, f32.
    o_ref : (1, row_tile, W, C)
    scratch (only when Kp != C): (row_tile+2, W+2, Kp) bf16 K-padding slab.
    """
    tr = row_tile
    wp2 = x_ref.shape[2]          # W + 2
    c = x_ref.shape[3]            # true channel count (HBM-visible)
    w = wp2 - 2
    kp = w1_ref.shape[1]          # lane-padded contraction width

    # Rows [row0, row0 + tr + 2) of the halo-padded image for this row tile.
    row0 = pl.multiple_of(pl.program_id(1) * tr, tr)
    xp = x_ref[0, pl.ds(row0, tr + 2)]                    # (tr+2, W+2, C) f32
    hrelu = jnp.maximum(xp, 0.0).astype(jnp.bfloat16)     # leading ReLU

    # Zero-pad the contraction dim to Kp inside VMEM only (no HBM inflation).
    # The zero lanes stay exactly zero through conv/BN/ReLU, so all matmuls
    # below are K-aligned.
    if kp == c:
        slab_full = hrelu
    else:
        pad_ref = scratch[0]                              # (tr+2, W+2, Kp)
        pad_ref[...] = jnp.zeros((tr + 2, wp2, kp), jnp.bfloat16)
        pad_ref[:, :, :c] = hrelu
        slab_full = pad_ref[...]

    # dj (sublane) shift hoisted: 3 repacked slabs; the di offsets below are
    # cheap row-range views into them (9 -> 3 relayout copies).
    slabs = [slab_full[:, dj:dj + w, :] for dj in range(3)]

    # 3x3 "SAME" conv = 9 accumulating MXU matmuls (in-VMEM im2col, bf16 in,
    # f32 accumulate); the first tap seeds the accumulator (no zeros-init).
    acc = None
    for di in range(3):
        for dj in range(3):
            win = slabs[dj][di:di + tr].reshape(tr * w, kp)
            part = jnp.dot(win, w1_ref[3 * di + dj],
                           preferred_element_type=jnp.float32)
            acc = part if acc is None else acc + part

    # BN1 (folded scale/shift) + ReLU in f32, then the 1x1 conv on the MXU.
    y = jnp.maximum(acc * s1_ref[...] + t1_ref[...], 0.0)      # (tr*W, Kp)
    z = jnp.dot(y.astype(jnp.bfloat16), w2_ref[...],
                preferred_element_type=jnp.float32)            # (tr*W, C)
    z = z * s2_ref[...] + t2_ref[...]                          # BN2

    # Residual add with the un-ReLU'd centre of x; store the row tile.
    xc = xp[1:1 + tr, 1:1 + w, :].reshape(tr * w, c)
    o_ref[0] = (xc + z).reshape(tr, w, c)


# ------------------------------ host wrapper -------------------------------

def residual_forward(params, x_nchw, *, row_tile=None):
    """Public entry: NCHW float32 in, NCHW float32 out (PyTorch convention)."""
    w1 = params["w1"]                       # (C, C, 3, 3) OIHW
    w2 = params["w2"]                       # (C, C, 1, 1) OIHW
    c = w1.shape[0]
    kp = ((c + LANE - 1) // LANE) * LANE    # MXU contraction (K) width
    n, _, h, w = x_nchw.shape

    if row_tile is None:
        row_tile = 8 if (h % 8 == 0 and h > 8) else h
    assert h % row_tile == 0, "row_tile must divide H"
    r_tiles = h // row_tile

    # --- layout glue (XLA side, tiny) ---------------------------------------
    # TODO(synk): accept NHWC (pre-halo-padded) here to drop these passes.
    x = jnp.transpose(x_nchw, (0, 2, 3, 1)).astype(jnp.float32)
    x = jnp.pad(x, ((0, 0), (1, 1), (1, 1), (0, 0)))      # spatial halo only

    # conv3x3 weights: OIHW -> [tap, in, out], K/N zero-padded to Kp, bf16.
    w1t = jnp.transpose(w1, (2, 3, 1, 0)).reshape(9, c, c)
    w1t = jnp.pad(w1t, ((0, 0), (0, kp - c), (0, kp - c))).astype(jnp.bfloat16)
    # conv1x1 weights: OIHW -> [in, out], K zero-padded to Kp, bf16.
    w2t = jnp.pad(jnp.transpose(w2[:, :, 0, 0], (1, 0)),
                  ((0, kp - c), (0, 0))).astype(jnp.bfloat16)

    def _fold_bn(g, b, m, v, width):
        s = g / jnp.sqrt(v + BN_EPS)
        t = b - m * s
        s = jnp.pad(s.astype(jnp.float32), (0, width - c)).reshape(1, width)
        t = jnp.pad(t.astype(jnp.float32), (0, width - c)).reshape(1, width)
        return s, t

    s1, t1 = _fold_bn(params["g1"], params["b1"], params["m1"], params["v1"], kp)
    s2, t2 = _fold_bn(params["g2"], params["b2"], params["m2"], params["v2"], c)

    # --- VMEM budget / cost hints -------------------------------------------
    blk = 2 * ((h + 2) * (w + 2) * c * 4 + row_tile * w * c * 4
               + (9 * kp * kp + kp * c) * 2 + (2 * kp + 2 * c) * 4)
    scr = (row_tile + 2) * (w + 2) * kp * 2
    live = (4 * (row_tile + 2) * (w + 2) * kp * 2
            + 3 * row_tile * w * kp * 4 + 3 * row_tile * w * c * 4)
    vmem_limit = int(min(max(2 * (blk + scr + live), 8 * 1024 * 1024),
                         96 * 1024 * 1024))

    cost = pl.CostEstimate(
        flops=int(2 * n * h * w * c * c * (9 + 1)),
        transcendentals=0,
        bytes_accessed=int(x.size * 4 + n * h * w * c * 4
                           + (w1t.size + w2t.size) * 2
                           + (s1.size + t1.size + s2.size + t2.size) * 4))

    scratch_shapes = []
    if kp != c:
        scratch_shapes.append(
            pltpu.VMEM((row_tile + 2, w + 2, kp), jnp.bfloat16))

    kernel = functools.partial(_residual_kernel, row_tile=row_tile)

    out = pl.pallas_call(
        kernel,
        grid=(n, r_tiles),
        in_specs=[
            pl.BlockSpec((1, h + 2, w + 2, c), lambda b, r: (b, 0, 0, 0)),
            pl.BlockSpec((9, kp, kp), lambda b, r: (0, 0, 0)),
            pl.BlockSpec((kp, c), lambda b, r: (0, 0)),
            pl.BlockSpec((1, kp), lambda b, r: (0, 0)),
            pl.BlockSpec((1, kp), lambda b, r: (0, 0)),
            pl.BlockSpec((1, c), lambda b, r: (0, 0)),
            pl.BlockSpec((1, c), lambda b, r: (0, 0)),
        ],
        out_specs=pl.BlockSpec((1, row_tile, w, c), lambda b, r: (b, r, 0, 0)),
        out_shape=jax.ShapeDtypeStruct((n, h, w, c), jnp.float32),
        scratch_shapes=scratch_shapes,
        compiler_params=pltpu.CompilerParams(
            dimension_semantics=("parallel", "parallel"),
            vmem_limit_bytes=vmem_limit),
        cost_estimate=cost,
    )(x, w1t, w2t, s1, t1, s2, t2)

    return jnp.transpose(out, (0, 3, 1, 2))  # NHWC -> NCHW


# ----------------------------- pure-JAX references ---------------------------

def residual_ref(params, x_nchw, mxu_dtype=jnp.float32):
    """Reference.  mxu_dtype=bfloat16 mirrors the kernel's MXU quantization."""
    def bn(t, g, b, m, v):
        g, b, m, v = (a[None, :, None, None] for a in (g, b, m, v))
        return (t - m) / jnp.sqrt(v + BN_EPS) * g + b

    dn = ("NCHW", "OIHW", "NCHW")

    def conv(t, wgt, pad):
        return lax.conv_general_dilated(
            t.astype(mxu_dtype), wgt.astype(mxu_dtype), (1, 1), pad,
            dimension_numbers=dn, preferred_element_type=jnp.float32)

    h = jnp.maximum(x_nchw, 0.0)
    h = conv(h, params["w1"], ((1, 1), (1, 1)))
    h = bn(h, params["g1"], params["b1"], params["m1"], params["v1"])
    h = jnp.maximum(h, 0.0)
    h = conv(h, params["w2"], ((0, 0), (0, 0)))
    h = bn(h, params["g2"], params["b2"], params["m2"], params["v2"])
    return x_nchw + h


# --------------------------------- params ----------------------------------

def init_params(key, channels):
    ks = jax.random.split(key, 10)
    bound1 = 1.0 / math.sqrt(channels * 3 * 3)
    bound2 = 1.0 / math.sqrt(channels * 1 * 1)

    def u(k, shape, lo, hi):
        return jax.random.uniform(k, shape, jnp.float32, lo, hi)

    return {
        "w1": u(ks[0], (channels, channels, 3, 3), -bound1, bound1),
        "w2": u(ks[1], (channels, channels, 1, 1), -bound2, bound2),
        # BatchNorm1 (gamma, beta, running_mean, running_var)
        "g1": u(ks[2], (channels,), 0.5, 1.5),
        "b1": u(ks[3], (channels,), -0.5, 0.5),
        "m1": u(ks[4], (channels,), -0.5, 0.5),
        "v1": u(ks[5], (channels,), 0.5, 1.5),
        # BatchNorm2
        "g2": u(ks[6], (channels,), 0.5, 1.5),
        "b2": u(ks[7], (channels,), -0.5, 0.5),
        "m2": u(ks[8], (channels,), -0.5, 0.5),
        "v2": u(ks[9], (channels,), 0.5, 1.5),
    }


# ----------------------------------- main -----------------------------------

if __name__ == "__main__":
    key = jax.random.PRNGKey(0)
    k_params, k_x = jax.random.split(key)

    N, C, H, W = 2, 4, 16, 16
    params = init_params(k_params, C)
    x = jax.random.normal(k_x, (N, C, H, W), jnp.float32)

    fwd = jax.jit(residual_forward)
    out = jax.block_until_ready(fwd(params, x))
    assert out.shape == (N, C, H, W)
    assert out.dtype == jnp.float32

    # Tight-ish check vs a reference that quantizes MXU inputs to bf16 exactly
    # like the kernel does (catches halo / tap-indexing / BN-fold bugs).
    ref_q = residual_ref(params, x, mxu_dtype=jnp.bfloat16)
    err_q = float(jnp.max(jnp.abs(out - ref_q)))
    assert err_q < 5e-2, f"mismatch vs bf16-matmul reference: {err_q}"

    # Loose envelope vs the exact f32 reference (bf16 MXU quantization noise).
    ref = residual_ref(params, x)
    err = float(jnp.max(jnp.abs(out - ref)))
    assert err < 2.5e-1, f"mismatch vs f32 reference: {err}"

    print("KERNEL_OK")
</pallas_src>

<mosaic_0001>
module attributes {stable_mosaic.version = 11 : i64} {
  func.func @_residual_kernel(%arg0: i32, %arg1: i32, %arg2: memref<1x18x18x4xf32, #tpu.memory_space<vmem>>, %arg3: memref<9x128x128xbf16, #tpu.memory_space<vmem>>, %arg4: memref<128x4xbf16, #tpu.memory_space<vmem>>, %arg5: memref<1x128xf32, #tpu.memory_space<vmem>>, %arg6: memref<1x128xf32, #tpu.memory_space<vmem>>, %arg7: memref<1x4xf32, #tpu.memory_space<vmem>>, %arg8: memref<1x4xf32, #tpu.memory_space<vmem>>, %arg9: memref<1x8x16x4xf32, #tpu.memory_space<vmem>>, %arg10: memref<10x18x128xbf16, #tpu.memory_space<vmem>>) attributes {dimension_semantics = [#tpu.dimension_semantics<parallel>, #tpu.dimension_semantics<parallel>], iteration_bounds = array<i64: 2, 2>, scalar_prefetch = 0 : i64, scratch_operands = 1 : i64, tpu.core_type = #tpu.core_type<tc>, window_params = [{transform_indices = @transform_0, window_bounds = array<i64: 1, 18, 18, 4>}, {pipeline_mode = #tpu.pipeline_mode<synchronous>, transform_indices = @transform_1, window_bounds = array<i64: 9, 128, 128>}, {pipeline_mode = #tpu.pipeline_mode<synchronous>, transform_indices = @transform_2, window_bounds = array<i64: 128, 4>}, {pipeline_mode = #tpu.pipeline_mode<synchronous>, transform_indices = @transform_3, window_bounds = array<i64: 1, 128>}, {pipeline_mode = #tpu.pipeline_mode<synchronous>, transform_indices = @transform_4, window_bounds = array<i64: 1, 128>}, {pipeline_mode = #tpu.pipeline_mode<synchronous>, transform_indices = @transform_5, window_bounds = array<i64: 1, 4>}, {pipeline_mode = #tpu.pipeline_mode<synchronous>, transform_indices = @transform_6, window_bounds = array<i64: 1, 4>}, {transform_indices = @transform_7, window_bounds = array<i64: 1, 8, 16, 4>}]} {
    %c8_i32 = arith.constant 8 : i32
    %0 = arith.muli %arg1, %c8_i32 : i32
    %1 = tpu.assume_multiple %0, 8 : i32
    %c0 = arith.constant 0 : index
    %2 = arith.index_cast %1 : i32 to index
    %c0_0 = arith.constant 0 : index
    %c0_1 = arith.constant 0 : index
    %3 = vector.load %arg2[%c0, %2, %c0_0, %c0_1] : memref<1x18x18x4xf32, #tpu.memory_space<vmem>>, vector<1x10x18x4xf32>
    %4 = vector.shape_cast %3 : vector<1x10x18x4xf32> to vector<10x18x4xf32>
    %cst = arith.constant 0.000000e+00 : f32
    %5 = vector.broadcast %cst : f32 to vector<10x18x4xf32>
    %6 = arith.maximumf %4, %5 : vector<10x18x4xf32>
    %7 = arith.truncf %6 : vector<10x18x4xf32> to vector<10x18x4xbf16>
    %cst_2 = arith.constant 0.000000e+00 : bf16
    %8 = vector.broadcast %cst_2 : bf16 to vector<10x18x128xbf16>
    %c0_3 = arith.constant 0 : index
    %c0_4 = arith.constant 0 : index
    %c0_5 = arith.constant 0 : index
    %9 = vector.load %arg10[%c0_3, %c0_4, %c0_5] : memref<10x18x128xbf16, #tpu.memory_space<vmem>>, vector<10x18x128xbf16>
    tpu.vector_store %arg10[%c0_3, %c0_4, %c0_5], %8 {strides = array<i32>} : memref<10x18x128xbf16, #tpu.memory_space<vmem>>, vector<10x18x128xbf16>,
    %c0_6 = arith.constant 0 : index
    %c0_7 = arith.constant 0 : index
    %c0_8 = arith.constant 0 : index
    %10 = vector.load %arg10[%c0_6, %c0_7, %c0_8] : memref<10x18x128xbf16, #tpu.memory_space<vmem>>, vector<10x18x4xbf16>
    tpu.vector_store %arg10[%c0_6, %c0_7, %c0_8], %7 {strides = array<i32>} : memref<10x18x128xbf16, #tpu.memory_space<vmem>>, vector<10x18x4xbf16>,
    %c0_9 = arith.constant 0 : index
    %c0_10 = arith.constant 0 : index
    %c0_11 = arith.constant 0 : index
    %11 = vector.load %arg10[%c0_9, %c0_10, %c0_11] : memref<10x18x128xbf16, #tpu.memory_space<vmem>>, vector<10x18x128xbf16>
    %12 = vector.extract_strided_slice %11 {offsets = [0, 0, 0], sizes = [10, 16, 128], strides = [1, 1, 1]} : vector<10x18x128xbf16> to vector<10x16x128xbf16>
    %13 = vector.extract_strided_slice %11 {offsets = [0, 1, 0], sizes = [10, 16, 128], strides = [1, 1, 1]} : vector<10x18x128xbf16> to vector<10x16x128xbf16>
    %14 = vector.extract_strided_slice %11 {offsets = [0, 2, 0], sizes = [10, 16, 128], strides = [1, 1, 1]} : vector<10x18x128xbf16> to vector<10x16x128xbf16>
    %15 = vector.extract_strided_slice %12 {offsets = [0, 0, 0], sizes = [8, 16, 128], strides = [1, 1, 1]} : vector<10x16x128xbf16> to vector<8x16x128xbf16>
    %16 = vector.shape_cast %15 : vector<8x16x128xbf16> to vector<128x128xbf16>
    %c0_12 = arith.constant 0 : index
    %c0_13 = arith.constant 0 : index
    %c0_14 = arith.constant 0 : index
    %17 = vector.load %arg3[%c0_12, %c0_13, %c0_14] : memref<9x128x128xbf16, #tpu.memory_space<vmem>>, vector<1x128x128xbf16>
    %18 = vector.shape_cast %17 : vector<1x128x128xbf16> to vector<128x128xbf16>
    %cst_15 = arith.constant dense<0.000000e+00> : vector<128x128xf32>
    %19 = tpu.matmul %16, %18, %cst_15 {dimension_numbers = #tpu.dot_dimension_numbers<[1], [0], [0], [1], [0, 0, 1, 1], [], []>} : vector<128x128xbf16>, vector<128x128xbf16>, vector<128x128xf32> -> vector<128x128xf32>
    %20 = vector.extract_strided_slice %13 {offsets = [0, 0, 0], sizes = [8, 16, 128], strides = [1, 1, 1]} : vector<10x16x128xbf16> to vector<8x16x128xbf16>
    %21 = vector.shape_cast %20 : vector<8x16x128xbf16> to vector<128x128xbf16>
    %c1 = arith.constant 1 : index
    %c0_16 = arith.constant 0 : index
    %c0_17 = arith.constant 0 : index
    %22 = vector.load %arg3[%c1, %c0_16, %c0_17] : memref<9x128x128xbf16, #tpu.memory_space<vmem>>, vector<1x128x128xbf16>
    %23 = vector.shape_cast %22 : vector<1x128x128xbf16> to vector<128x128xbf16>
    %cst_18 = arith.constant dense<0.000000e+00> : vector<128x128xf32>
    %24 = tpu.matmul %21, %23, %cst_18 {dimension_numbers = #tpu.dot_dimension_numbers<[1], [0], [0], [1], [0, 0, 1, 1], [], []>} : vector<128x128xbf16>, vector<128x128xbf16>, vector<128x128xf32> -> vector<128x128xf32>
    %25 = arith.addf %19, %24 : vector<128x128xf32>
    %26 = vector.extract_strided_slice %14 {offsets = [0, 0, 0], sizes = [8, 16, 128], strides = [1, 1, 1]} : vector<10x16x128xbf16> to vector<8x16x128xbf16>
    %27 = vector.shape_cast %26 : vector<8x16x128xbf16> to vector<128x128xbf16>
    %c2 = arith.constant 2 : index
    %c0_19 = arith.constant 0 : index
    %c0_20 = arith.constant 0 : index
    %28 = vector.load %arg3[%c2, %c0_19, %c0_20] : memref<9x128x128xbf16, #tpu.memory_space<vmem>>, vector<1x128x128xbf16>
    %29 = vector.shape_cast %28 : vector<1x128x128xbf16> to vector<128x128xbf16>
    %cst_21 = arith.constant dense<0.000000e+00> : vector<128x128xf32>
    %30 = tpu.matmul %27, %29, %cst_21 {dimension_numbers = #tpu.dot_dimension_numbers<[1], [0], [0], [1], [0, 0, 1, 1], [], []>} : vector<128x128xbf16>, vector<128x128xbf16>, vector<128x128xf32> -> vector<128x128xf32>
    %31 = arith.addf %25, %30 : vector<128x128xf32>
    %32 = vector.extract_strided_slice %12 {offsets = [1, 0, 0], sizes = [8, 16, 128], strides = [1, 1, 1]} : vector<10x16x128xbf16> to vector<8x16x128xbf16>
    %33 = vector.shape_cast %32 : vector<8x16x128xbf16> to vector<128x128xbf16>
    %c3 = arith.constant 3 : index
    %c0_22 = arith.constant 0 : index
    %c0_23 = arith.constant 0 : index
    %34 = vector.load %arg3[%c3, %c0_22, %c0_23] : memref<9x128x128xbf16, #tpu.memory_space<vmem>>, vector<1x128x128xbf16>
    %35 = vector.shape_cast %34 : vector<1x128x128xbf16> to vector<128x128xbf16>
    %cst_24 = arith.constant dense<0.000000e+00> : vector<128x128xf32>
    %36 = tpu.matmul %33, %35, %cst_24 {dimension_numbers = #tpu.dot_dimension_numbers<[1], [0], [0], [1], [0, 0, 1, 1], [], []>} : vector<128x128xbf16>, vector<128x128xbf16>, vector<128x128xf32> -> vector<128x128xf32>
    %37 = arith.addf %31, %36 : vector<128x128xf32>
    %38 = vector.extract_strided_slice %13 {offsets = [1, 0, 0], sizes = [8, 16, 128], strides = [1, 1, 1]} : vector<10x16x128xbf16> to vector<8x16x128xbf16>
    %39 = vector.shape_cast %38 : vector<8x16x128xbf16> to vector<128x128xbf16>
    %c4 = arith.constant 4 : index
    %c0_25 = arith.constant 0 : index
    %c0_26 = arith.constant 0 : index
    %40 = vector.load %arg3[%c4, %c0_25, %c0_26] : memref<9x128x128xbf16, #tpu.memory_space<vmem>>, vector<1x128x128xbf16>
    %41 = vector.shape_cast %40 : vector<1x128x128xbf16> to vector<128x128xbf16>
    %cst_27 = arith.constant dense<0.000000e+00> : vector<128x128xf32>
    %42 = tpu.matmul %39, %41, %cst_27 {dimension_numbers = #tpu.dot_dimension_numbers<[1], [0], [0], [1], [0, 0, 1, 1], [], []>} : vector<128x128xbf16>, vector<128x128xbf16>, vector<128x128xf32> -> vector<128x128xf32>
    %43 = arith.addf %37, %42 : vector<128x128xf32>
    %44 = vector.extract_strided_slice %14 {offsets = [1, 0, 0], sizes = [8, 16, 128], strides = [1, 1, 1]} : vector<10x16x128xbf16> to vector<8x16x128xbf16>
    %45 = vector.shape_cast %44 : vector<8x16x128xbf16> to vector<128x128xbf16>
    %c5 = arith.constant 5 : index
    %c0_28 = arith.constant 0 : index
    %c0_29 = arith.constant 0 : index
    %46 = vector.load %arg3[%c5, %c0_28, %c0_29] : memref<9x128x128xbf16, #tpu.memory_space<vmem>>, vector<1x128x128xbf16>
    %47 = vector.shape_cast %46 : vector<1x128x128xbf16> to vector<128x128xbf16>
    %cst_30 = arith.constant dense<0.000000e+00> : vector<128x128xf32>
    %48 = tpu.matmul %45, %47, %cst_30 {dimension_numbers = #tpu.dot_dimension_numbers<[1], [0], [0], [1], [0, 0, 1, 1], [], []>} : vector<128x128xbf16>, vector<128x128xbf16>, vector<128x128xf32> -> vector<128x128xf32>
    %49 = arith.addf %43, %48 : vector<128x128xf32>
    %50 = vector.extract_strided_slice %12 {offsets = [2, 0, 0], sizes = [8, 16, 128], strides = [1, 1, 1]} : vector<10x16x128xbf16> to vector<8x16x128xbf16>
    %51 = vector.shape_cast %50 : vector<8x16x128xbf16> to vector<128x128xbf16>
    %c6 = arith.constant 6 : index
    %c0_31 = arith.constant 0 : index
    %c0_32 = arith.constant 0 : index
    %52 = vector.load %arg3[%c6, %c0_31, %c0_32] : memref<9x128x128xbf16, #tpu.memory_space<vmem>>, vector<1x128x128xbf16>
    %53 = vector.shape_cast %52 : vector<1x128x128xbf16> to vector<128x128xbf16>
    %cst_33 = arith.constant dense<0.000000e+00> : vector<128x128xf32>
    %54 = tpu.matmul %51, %53, %cst_33 {dimension_numbers = #tpu.dot_dimension_numbers<[1], [0], [0], [1], [0, 0, 1, 1], [], []>} : vector<128x128xbf16>, vector<128x128xbf16>, vector<128x128xf32> -> vector<128x128xf32>
    %55 = arith.addf %49, %54 : vector<128x128xf32>
    %56 = vector.extract_strided_slice %13 {offsets = [2, 0, 0], sizes = [8, 16, 128], strides = [1, 1, 1]} : vector<10x16x128xbf16> to vector<8x16x128xbf16>
    %57 = vector.shape_cast %56 : vector<8x16x128xbf16> to vector<128x128xbf16>
    %c7 = arith.constant 7 : index
    %c0_34 = arith.constant 0 : index
    %c0_35 = arith.constant 0 : index
    %58 = vector.load %arg3[%c7, %c0_34, %c0_35] : memref<9x128x128xbf16, #tpu.memory_space<vmem>>, vector<1x128x128xbf16>
    %59 = vector.shape_cast %58 : vector<1x128x128xbf16> to vector<128x128xbf16>
    %cst_36 = arith.constant dense<0.000000e+00> : vector<128x128xf32>
    %60 = tpu.matmul %57, %59, %cst_36 {dimension_numbers = #tpu.dot_dimension_numbers<[1], [0], [0], [1], [0, 0, 1, 1], [], []>} : vector<128x128xbf16>, vector<128x128xbf16>, vector<128x128xf32> -> vector<128x128xf32>
    %61 = arith.addf %55, %60 : vector<128x128xf32>
    %62 = vector.extract_strided_slice %14 {offsets = [2, 0, 0], sizes = [8, 16, 128], strides = [1, 1, 1]} : vector<10x16x128xbf16> to vector<8x16x128xbf16>
    %63 = vector.shape_cast %62 : vector<8x16x128xbf16> to vector<128x128xbf16>
    %c8 = arith.constant 8 : index
    %c0_37 = arith.constant 0 : index
    %c0_38 = arith.constant 0 : index
    %64 = vector.load %arg3[%c8, %c0_37, %c0_38] : memref<9x128x128xbf16, #tpu.memory_space<vmem>>, vector<1x128x128xbf16>
    %65 = vector.shape_cast %64 : vector<1x128x128xbf16> to vector<128x128xbf16>
    %cst_39 = arith.constant dense<0.000000e+00> : vector<128x128xf32>
    %66 = tpu.matmul %63, %65, %cst_39 {dimension_numbers = #tpu.dot_dimension_numbers<[1], [0], [0], [1], [0, 0, 1, 1], [], []>} : vector<128x128xbf16>, vector<128x128xbf16>, vector<128x128xf32> -> vector<128x128xf32>
    %67 = arith.addf %61, %66 : vector<128x128xf32>
    %c0_40 = arith.constant 0 : index
    %c0_41 = arith.constant 0 : index
    %68 = vector.load %arg5[%c0_40, %c0_41] : memref<1x128xf32, #tpu.memory_space<vmem>>, vector<1x128xf32>
    %69 = vector.broadcast %68 : vector<1x128xf32> to vector<128x128xf32>
    %70 = arith.mulf %67, %69 : vector<128x128xf32>
    %c0_42 = arith.constant 0 : index
    %c0_43 = arith.constant 0 : index
    %71 = vector.load %arg6[%c0_42, %c0_43] : memref<1x128xf32, #tpu.memory_space<vmem>>, vector<1x128xf32>
    %72 = vector.broadcast %71 : vector<1x128xf32> to vector<128x128xf32>
    %73 = arith.addf %70, %72 : vector<128x128xf32>
    %cst_44 = arith.constant 0.000000e+00 : f32
    %74 = vector.broadcast %cst_44 : f32 to vector<128x128xf32>
    %75 = arith.maximumf %73, %74 : vector<128x128xf32>
    %76 = arith.truncf %75 : vector<128x128xf32> to vector<128x128xbf16>
    %c0_45 = arith.constant 0 : index
    %c0_46 = arith.constant 0 : index
    %77 = vector.load %arg4[%c0_45, %c0_46] : memref<128x4xbf16, #tpu.memory_space<vmem>>, vector<128x4xbf16>
    %cst_47 = arith.constant dense<0.000000e+00> : vector<128x4xf32>
    %78 = tpu.matmul %76, %77, %cst_47 {dimension_numbers = #tpu.dot_dimension_numbers<[1], [0], [0], [1], [0, 0, 1, 1], [], []>} : vector<128x128xbf16>, vector<128x4xbf16>, vector<128x4xf32> -> vector<128x4xf32>
    %c0_48 = arith.constant 0 : index
    %c0_49 = arith.constant 0 : index
    %79 = vector.load %arg7[%c0_48, %c0_49] : memref<1x4xf32, #tpu.memory_space<vmem>>, vector<1x4xf32>
    %80 = vector.broadcast %79 : vector<1x4xf32> to vector<128x4xf32>
    %81 = arith.mulf %78, %80 : vector<128x4xf32>
    %c0_50 = arith.constant 0 : index
    %c0_51 = arith.constant 0 : index
    %82 = vector.load %arg8[%c0_50, %c0_51] : memref<1x4xf32, #tpu.memory_space<vmem>>, vector<1x4xf32>
    %83 = vector.broadcast %82 : vector<1x4xf32> to vector<128x4xf32>
    %84 = arith.addf %81, %83 : vector<128x4xf32>
    %85 = vector.extract_strided_slice %4 {offsets = [1, 1, 0], sizes = [8, 16, 4], strides = [1, 1, 1]} : vector<10x18x4xf32> to vector<8x16x4xf32>
    %86 = vector.shape_cast %85 : vector<8x16x4xf32> to vector<128x4xf32>
    %87 = arith.addf %86, %84 : vector<128x4xf32>
    %88 = vector.shape_cast %87 : vector<128x4xf32> to vector<8x16x4xf32>
    %c0_52 = arith.constant 0 : index
    %c0_53 = arith.constant 0 : index
    %c0_54 = arith.constant 0 : index
    %c0_55 = arith.constant 0 : index
    %89 = vector.load %arg9[%c0_52, %c0_53, %c0_54, %c0_55] : memref<1x8x16x4xf32, #tpu.memory_space<vmem>>, vector<1x8x16x4xf32>
    %90 = vector.shape_cast %89 : vector<1x8x16x4xf32> to vector<8x16x4xf32>
    %91 = vector.shape_cast %88 : vector<8x16x4xf32> to vector<1x8x16x4xf32>
    tpu.vector_store %arg9[%c0_52, %c0_53, %c0_54, %c0_55], %91 {strides = array<i32>} : memref<1x8x16x4xf32, #tpu.memory_space<vmem>>, vector<1x8x16x4xf32>,
    return
  }
  func.func @transform_0(%arg0: i32, %arg1: i32) -> (i32, i32, i32, i32) {
    %c0_i32 = arith.constant 0 : i32
    %c0_i32_0 = arith.constant 0 : i32
    %c0_i32_1 = arith.constant 0 : i32
    %c0_i32_2 = arith.constant 0 : i32
    return %arg0, %c0_i32, %c0_i32_0, %c0_i32_1 : i32, i32, i32, i32
  }
  func.func @transform_1(%arg0: i32, %arg1: i32) -> (i32, i32, i32) {
    %c0_i32 = arith.constant 0 : i32
    %c0_i32_0 = arith.constant 0 : i32
    %c0_i32_1 = arith.constant 0 : i32
    %c0_i32_2 = arith.constant 0 : i32
    return %c0_i32, %c0_i32_0, %c0_i32_1 : i32, i32, i32
  }
  func.func @transform_2(%arg0: i32, %arg1: i32) -> (i32, i32) {
    %c0_i32 = arith.constant 0 : i32
    %c0_i32_0 = arith.constant 0 : i32
    %c0_i32_1 = arith.constant 0 : i32
    return %c0_i32, %c0_i32_0 : i32, i32
  }
  func.func @transform_3(%arg0: i32, %arg1: i32) -> (i32, i32) {
    %c0_i32 = arith.constant 0 : i32
    %c0_i32_0 = arith.constant 0 : i32
    %c0_i32_1 = arith.constant 0 : i32
    return %c0_i32, %c0_i32_0 : i32, i32
  }
  func.func @transform_4(%arg0: i32, %arg1: i32) -> (i32, i32) {
    %c0_i32 = arith.constant 0 : i32
    %c0_i32_0 = arith.constant 0 : i32
    %c0_i32_1 = arith.constant 0 : i32
    return %c0_i32, %c0_i32_0 : i32, i32
  }
  func.func @transform_5(%arg0: i32, %arg1: i32) -> (i32, i32) {
    %c0_i32 = arith.constant 0 : i32
    %c0_i32_0 = arith.constant 0 : i32
    %c0_i32_1 = arith.constant 0 : i32
    return %c0_i32, %c0_i32_0 : i32, i32
  }
  func.func @transform_6(%arg0: i32, %arg1: i32) -> (i32, i32) {
    %c0_i32 = arith.constant 0 : i32
    %c0_i32_0 = arith.constant 0 : i32
    %c0_i32_1 = arith.constant 0 : i32
    return %c0_i32, %c0_i32_0 : i32, i32
  }
  func.func @transform_7(%arg0: i32, %arg1: i32) -> (i32, i32, i32, i32) {
    %c0_i32 = arith.constant 0 : i32
    %c0_i32_0 = arith.constant 0 : i32
    %c0_i32_1 = arith.constant 0 : i32
    return %arg0, %arg1, %c0_i32, %c0_i32_0 : i32, i32, i32, i32
  }
}

</mosaic_0001>

<llo_original>
// kernel: residual_forward.1
$region0: #{residual_forward.1}
  #allocation0 [shape = 'u32[]', space=smem, size = 0x4, offset = 0x4, fixed_abs, tag = 'smem constant byte address 0x4 - core index']
  #allocation1 [shape = 'u32[144,128]{1,0:T(1,128)}', space=vmem, size = 0x12000, scoped, tag = 'internal scratch']
  #allocation2 [shape = 'bf16[10,18,128]{2,1,0:T(8,128)(2,1)}', space=vmem, size = 0xf000, scoped, tag = 'scratch operand']
  %s0 = inlined_call_operand.vmem [shape: f32[2,18,18,4], index: 0, kind: input, shape index: {}]
  %s1 = inlined_call_operand.vmem [shape: bf16[9,128,128], index: 1, kind: input, shape index: {}]
  %s2 = inlined_call_operand.vmem [shape: bf16[128,4], index: 2, kind: input, shape index: {}]
  %s3 = inlined_call_operand.vmem [shape: f32[1,128], index: 3, kind: input, shape index: {}]
  %s4 = inlined_call_operand.vmem [shape: f32[1,128], index: 4, kind: input, shape index: {}]
  %s5 = inlined_call_operand.vmem [shape: f32[1,4], index: 5, kind: input, shape index: {}]
  %s6 = inlined_call_operand.vmem [shape: f32[1,4], index: 6, kind: input, shape index: {}]
  %s7 = inlined_call_operand.vmem [shape: f32[2,16,16,4], index: 7, kind: output, shape index: {}]
  %s8 = sld [smem:[#allocation0]]
  $region61: #{residual_forward.1} parent=0
    _
  %s10 = ssub.s32 1, %s8
  %s11 = scalar_select 0, %s10, %s8
  loop: start=0, step=1, limit=6
  $region2: #{residual_forward.1} parent=0 // loop_pre_header
    _
  $region3: #{residual_forward.1} parent=0 // loop_header
    %s13 = sphi 0, %s17
    %p14 = scmp.ge.s32.totalorder %s13, 6
    %s20 = sphi 0, %s32
    %s21 = sphi 0, %s28
    %s22 = sphi 0, %s20
    %s23 = sphi 0, %s21
    %s24 = sphi 0, %s22
    %s25 = sphi 0, %s23
    %s35 = sphi 0, %s37
    %s38 = sphi 0, %s35
    %s39 = sphi 0, %s38
    %s55 = sphi 0, %s39
    %s59 = sphi 0, %s59
    %s61 = sphi 0, %s59
    %s62 = sphi 0, %s61
    %s76 = sphi 0, %s62
    %s80 = sphi 0, %s80
    %s82 = sphi 0, %s80
    %s83 = sphi 0, %s82
    %s97 = sphi 0, %s83
    %s101 = sphi 0, %s101
    %s103 = sphi 0, %s101
    %s104 = sphi 0, %s103
    %s118 = sphi 0, %s104
    %s122 = sphi 0, %s122
    %s124 = sphi 0, %s122
    %s125 = sphi 0, %s124
    %s139 = sphi 0, %s125
    %s143 = sphi 0, %s143
    %s145 = sphi 0, %s143
    %s146 = sphi 0, %s145
    %s160 = sphi 0, %s146
    %s164 = sphi 0, %s164
    %s166 = sphi 0, %s164
    %s167 = sphi 0, %s166
    %s181 = sphi 0, %s167
    %s189 = sphi 0, %s191
    %s192 = sphi 0, %s189
    %s193 = sphi 0, %s192
    %s209 = sphi 0, %s193
  $region4: #{residual_forward.1} parent=0 // loop_header_branch
    %16 = sbr.rel (%p14) target = $region8
  $region5: #{residual_forward.1} parent=0 // loop_body
    %s18 = ssub.s32 %s13, 1
    %s19 = ssub.s32 %s13, 2
    %s26 = sadd.s32 1, %s21
    %p27 = scmp.ge.s32.totalorder %s26, 2
    %s28 = scalar_select %p27, 0, %s26
    %s29 = sadd.s32 1, %s20
    %s30 = scalar_select %p27, %s29, %s20
    %p31 = scmp.ge.s32.totalorder %s30, 2
    %s32 = scalar_select %p31, 0, %s30
    %s33 = ssub.s32 %s20, %s32
    %p34 = scmp.eq.s32.totalorder %s33, 0
    %s36 = sadd.s32 %s35, 1
    %s37 = scalar_select %p34, %s35, %s36
    %p40 = pneg %p34
    %p41 = scmp.eq.s32.totalorder %s13, 3
    %p42 = por %p40, %p41
    %p43 = scmp.ne.s32.totalorder %s35, %s38
    %p44 = scmp.eq.s32.totalorder %s13, 0
    %p45 = por %p43, %p44
    %p46 = scmp.ne.s32.totalorder %s35, %s38
    %p47 = scmp.eq.s32.totalorder %s18, 3
    %p48 = por %p46, %p47
    %p49 = scmp.ne.s32.totalorder %s38, %s39
    %p50 = scmp.eq.s32.totalorder %s18, 0
    %p51 = por %p49, %p50
    %p52 = scmp.ne.s32.totalorder %s38, %s39
    %p53 = scmp.eq.s32.totalorder %s19, 3
    %p54 = por %p52, %p53
    %p56 = scmp.ne.s32.totalorder %s39, %s55
    %p57 = scmp.eq.s32.totalorder %s19, 0
    %p58 = por %p56, %p57
    %s60 = sadd.s32 %s59, 1
    %p63 = scmp.eq.s32.totalorder %s13, 3
    %p64 = scmp.ne.s32.totalorder %s59, %s61
    %p65 = scmp.eq.s32.totalorder %s13, 0
    %p66 = por %p64, %p65
    %p67 = scmp.ne.s32.totalorder %s59, %s61
    %p68 = scmp.eq.s32.totalorder %s18, 3
    %p69 = por %p67, %p68
    %p70 = scmp.ne.s32.totalorder %s61, %s62
    %p71 = scmp.eq.s32.totalorder %s18, 0
    %p72 = por %p70, %p71
    %p73 = scmp.ne.s32.totalorder %s61, %s62
    %p74 = scmp.eq.s32.totalorder %s19, 3
    %p75 = por %p73, %p74
    %p77 = scmp.ne.s32.totalorder %s62, %s76
    %p78 = scmp.eq.s32.totalorder %s19, 0
    %p79 = por %p77, %p78
    %s81 = sadd.s32 %s80, 1
    %p84 = scmp.eq.s32.totalorder %s13, 3
    %p85 = scmp.ne.s32.totalorder %s80, %s82
    %p86 = scmp.eq.s32.totalorder %s13, 0
    %p87 = por %p85, %p86
    %p88 = scmp.ne.s32.totalorder %s80, %s82
    %p89 = scmp.eq.s32.totalorder %s18, 3
    %p90 = por %p88, %p89
    %p91 = scmp.ne.s32.totalorder %s82, %s83
    %p92 = scmp.eq.s32.totalorder %s18, 0
    %p93 = por %p91, %p92
    %p94 = scmp.ne.s32.totalorder %s82, %s83
    %p95 = scmp.eq.s32.totalorder %s19, 3
    %p96 = por %p94, %p95
    %p98 = scmp.ne.s32.totalorder %s83, %s97
    %p99 = scmp.eq.s32.totalorder %s19, 0
    %p100 = por %p98, %p99
    %s102 = sadd.s32 %s101, 1
    %p105 = scmp.eq.s32.totalorder %s13, 3
    %p106 = scmp.ne.s32.totalorder %s101, %s103
    %p107 = scmp.eq.s32.totalorder %s13, 0
    %p108 = por %p106, %p107
    %p109 = scmp.ne.s32.totalorder %s101, %s103
    %p110 = scmp.eq.s32.totalorder %s18, 3
    %p111 = por %p109, %p110
    %p112 = scmp.ne.s32.totalorder %s103, %s104
    %p113 = scmp.eq.s32.totalorder %s18, 0
    %p114 = por %p112, %p113
    %p115 = scmp.ne.s32.totalorder %s103, %s104
    %p116 = scmp.eq.s32.totalorder %s19, 3
    %p117 = por %p115, %p116
    %p119 = scmp.ne.s32.totalorder %s104, %s118
    %p120 = scmp.eq.s32.totalorder %s19, 0
    %p121 = por %p119, %p120
    %s123 = sadd.s32 %s122, 1
    %p126 = scmp.eq.s32.totalorder %s13, 3
    %p127 = scmp.ne.s32.totalorder %s122, %s124
    %p128 = scmp.eq.s32.totalorder %s13, 0
    %p129 = por %p127, %p128
    %p130 = scmp.ne.s32.totalorder %s122, %s124
    %p131 = scmp.eq.s32.totalorder %s18, 3
    %p132 = por %p130, %p131
    %p133 = scmp.ne.s32.totalorder %s124, %s125
    %p134 = scmp.eq.s32.totalorder %s18, 0
    %p135 = por %p133, %p134
    %p136 = scmp.ne.s32.totalorder %s124, %s125
    %p137 = scmp.eq.s32.totalorder %s19, 3
    %p138 = por %p136, %p137
    %p140 = scmp.ne.s32.totalorder %s125, %s139
    %p141 = scmp.eq.s32.totalorder %s19, 0
    %p142 = por %p140, %p141
    %s144 = sadd.s32 %s143, 1
    %p147 = scmp.eq.s32.totalorder %s13, 3
    %p148 = scmp.ne.s32.totalorder %s143, %s145
    %p149 = scmp.eq.s32.totalorder %s13, 0
    %p150 = por %p148, %p149
    %p151 = scmp.ne.s32.totalorder %s143, %s145
    %p152 = scmp.eq.s32.totalorder %s18, 3
    %p153 = por %p151, %p152
    %p154 = scmp.ne.s32.totalorder %s145, %s146
    %p155 = scmp.eq.s32.totalorder %s18, 0
    %p156 = por %p154, %p155
    %p157 = scmp.ne.s32.totalorder %s145, %s146
    %p158 = scmp.eq.s32.totalorder %s19, 3
    %p159 = por %p157, %p158
    %p161 = scmp.ne.s32.totalorder %s146, %s160
    %p162 = scmp.eq.s32.totalorder %s19, 0
    %p163 = por %p161, %p162
    %s165 = sadd.s32 %s164, 1
    %p168 = scmp.eq.s32.totalorder %s13, 3
    %p169 = scmp.ne.s32.totalorder %s164, %s166
    %p170 = scmp.eq.s32.totalorder %s13, 0
    %p171 = por %p169, %p170
    %p172 = scmp.ne.s32.totalorder %s164, %s166
    %p173 = scmp.eq.s32.totalorder %s18, 3
    %p174 = por %p172, %p173
    %p175 = scmp.ne.s32.totalorder %s166, %s167
    %p176 = scmp.eq.s32.totalorder %s18, 0
    %p177 = por %p175, %p176
    %p178 = scmp.ne.s32.totalorder %s166, %s167
    %p179 = scmp.eq.s32.totalorder %s19, 3
    %p180 = por %p178, %p179
    %p182 = scmp.ne.s32.totalorder %s167, %s181
    %p183 = scmp.eq.s32.totalorder %s19, 0
    %p184 = por %p182, %p183
    %s185 = ssub.s32 %s20, %s32
    %s186 = ssub.s32 %s21, %s28
    %s187 = sor.u32 %s185, %s186
    %p188 = scmp.eq.s32.totalorder %s187, 0
    %s190 = sadd.s32 %s189, 1
    %s191 = scalar_select %p188, %s189, %s190
    %p194 = pneg %p188
    %p195 = scmp.eq.s32.totalorder %s13, 3
    %p196 = por %p194, %p195
    %p197 = scmp.ne.s32.totalorder %s189, %s192
    %p198 = scmp.eq.s32.totalorder %s13, 0
    %p199 = por %p197, %p198
    %p200 = scmp.ne.s32.totalorder %s189, %s192
    %p201 = scmp.eq.s32.totalorder %s18, 3
    %p202 = por %p200, %p201
    %p203 = scmp.ne.s32.totalorder %s192, %s193
    %p204 = scmp.eq.s32.totalorder %s18, 0
    %p205 = por %p203, %p204
    %p206 = scmp.ne.s32.totalorder %s192, %s193
    %p207 = scmp.eq.s32.totalorder %s19, 3
    %p208 = por %p206, %p207
    %p210 = scmp.ne.s32.totalorder %s193, %s209
    %p211 = scmp.eq.s32.totalorder %s19, 0
    %p212 = por %p210, %p211
    %p213 = scmp.le.s32.totalorder 1, %s13
    %p214 = scmp.lt.s32.totalorder %s13, 5
    %p215 = pnand %p213, %p214
    %p216 = pneg %p215
    // Predicated region
    $region9: #{residual_forward.1} parent=5 // pred_check
      _
    $region10: #{residual_forward.1} parent=5 // pred_check_branch
      %218 = sbr.rel (%p215) target = $region12
    $region11: #{residual_forward.1} parent=5 // pred_region
      %s219 = ssub.s32 %s13, 1
      // Predicated region
      $region13: #{residual_forward.1} parent=11 // pred_check
        %p220 = pneg %p72
      $region14: #{residual_forward.1} parent=11 // pred_check_branch
        %222 = sbr.rel (%p220) target = $region16
      $region15: #{residual_forward.1} parent=11 // pred_region
        _
      $region16: #{residual_forward.1} parent=11 // pred_fallthru
        _
      // Predicated region
      $region17: #{residual_forward.1} parent=11 // pred_check
        %p223 = pneg %p93
      $region18: #{residual_forward.1} parent=11 // pred_check_branch
        %225 = sbr.rel (%p223) target = $region20
      $region19: #{residual_forward.1} parent=11 // pred_region
        _
      $region20: #{residual_forward.1} parent=11 // pred_fallthru
        _
      // Predicated region
      $region21: #{residual_forward.1} parent=11 // pred_check
        %p226 = pneg %p114
      $region22: #{residual_forward.1} parent=11 // pred_check_branch
        %228 = sbr.rel (%p226) target = $region24
      $region23: #{residual_forward.1} parent=11 // pred_region
        _
      $region24: #{residual_forward.1} parent=11 // pred_fallthru
        _
      // Predicated region
      $region25: #{residual_forward.1} parent=11 // pred_check
        %p229 = pneg %p135
      $region26: #{residual_forward.1} parent=11 // pred_check_branch
        %231 = sbr.rel (%p229) target = $region28
      $region27: #{residual_forward.1} parent=11 // pred_region
        _
      $region28: #{residual_forward.1} parent=11 // pred_fallthru
        _
      // Predicated region
      $region29: #{residual_forward.1} parent=11 // pred_check
        %p232 = pneg %p156
      $region30: #{residual_forward.1} parent=11 // pred_check_branch
        %234 = sbr.rel (%p232) target = $region32
      $region31: #{residual_forward.1} parent=11 // pred_region
        _
      $region32: #{residual_forward.1} parent=11 // pred_fallthru
        _
      // Predicated region
      $region33: #{residual_forward.1} parent=11 // pred_check
        %p235 = pneg %p177
      $region34: #{residual_forward.1} parent=11 // pred_check_branch
        %237 = sbr.rel (%p235) target = $region36
      $region35: #{residual_forward.1} parent=11 // pred_region
        _
      $region36: #{residual_forward.1} parent=11 // pred_fallthru
        _
    $region12: #{residual_forward.1} parent=5 // pred_fallthru
      _
    %p238 = scmp.lt.s32.totalorder %s13, 4
    // Predicated region
    $region37: #{residual_forward.1} parent=5 // pred_check
      %p239 = pneg %p238
    $region38: #{residual_forward.1} parent=5 // pred_check_branch
      %241 = sbr.rel (%p239) target = $region40
    $region39: #{residual_forward.1} parent=5 // pred_region
      // Predicated region
      $region41: #{residual_forward.1} parent=39 // pred_check
        %p242 = pneg %p45
      $region42: #{residual_forward.1} parent=39 // pred_check_branch
        %244 = sbr.rel (%p242) target = $region44
      $region43: #{residual_forward.1} parent=39 // pred_region
        %p245 = scmp.lt.s32.totalorder %s20, 1
        %s246 = scalar_select %p245, %s20, 1
        %s247 = smul.addr %s246, 54
        %s248 = smul.addr %s247, 8
        %s249 = scalar_lea.vmem %s0, %s248
      $region44: #{residual_forward.1} parent=39 // pred_fallthru
        _
    $region40: #{residual_forward.1} parent=5 // pred_fallthru
      _
    %p250 = scmp.le.s32.totalorder 1, %s13
    %p251 = scmp.lt.s32.totalorder %s13, 5
    %p252 = pnand %p250, %p251
    %p253 = pneg %p252
    // Predicated region
    $region45: #{residual_forward.1} parent=5 // pred_check
      _
    $region46: #{residual_forward.1} parent=5 // pred_check_branch
      %255 = sbr.rel (%p252) target = $region48
    $region47: #{residual_forward.1} parent=5 // pred_region
      %s256 = ssub.s32 %s13, 1
      %p257 = scmp.lt.s32.totalorder %s22, 1
      %s258 = scalar_select %p257, %s22, 1
      %s259 = smul.addr %s258, 54
      %s260 = smul.addr %s259, 8
      %s261 = scalar_lea.vmem %s0, %s260
      %p262 = pneg %p51
      %p263 = pneg %p48
      %p264 = pneg %p72
      %p265 = pneg %p69
      %p266 = pneg %p93
      %p267 = pneg %p90
      %p268 = pneg %p114
      %p269 = pneg %p111
      %p270 = pneg %p135
      %p271 = pneg %p132
      %p272 = pneg %p156
      %p273 = pneg %p153
      %p274 = pneg %p177
      %p275 = pneg %p174
      %p276 = pneg %p205
      %p277 = pneg %p202
      %s278 = smul.u32 8, %s23
      %p279 = scmp.lt.s32.totalorder %s22, 1
      %s280 = scalar_select %p279, %s22, 1
      %p281 = scmp.lt.s32.totalorder %s278, 15
      %s282 = scalar_select %p281, %s278, 15
      %s283 = smul.addr %s282, 2
      %s284 = smul.addr %s280, 32
      %s285 = sadd.s32 %s283, %s284
      %s286 = smul.addr %s285, 8
      %s287 = scalar_lea.vmem %s7, %s286
      %p288 = scmp.lt.s32.totalorder %s22, 1
      %s289 = scalar_select %p288, %s22, 1
      %s290 = smul.addr %s289, 54
      %s291 = smul.addr %s290, 8
      %s292 = scalar_lea.vmem %s0, %s291
      %s293 = smul.u32 8, %s23
      %p294 = scmp.lt.s32.totalorder %s22, 1
      %s295 = scalar_select %p294, %s22, 1
      %p296 = scmp.lt.s32.totalorder %s293, 15
      %s297 = scalar_select %p296, %s293, 15
      %s298 = smul.addr %s297, 2
      %s299 = smul.addr %s295, 32
      %s300 = sadd.s32 %s298, %s299
      %s301 = smul.addr %s300, 8
      %s302 = scalar_lea.vmem %s7, %s301
      %s303 = smul.u32 8, %s23
      %s305 = smul.u32 %s23, 8
      %s306 = smul.u32 %s305, 24
      %s307 = scalar_lea.vmem %s292, %s306
      %v308 = vld [vmem:[%s307] sm:$0xff]
      %v309 = vld [vmem:[%s307 + $0x8] sm:$0xff]
      %v310 = vld [vmem:[%s307 + $0x10] sm:$0x3]
      %v311 = vld [vmem:[%s307 + $0x18] sm:$0xff]
      %v312 = vld [vmem:[%s307 + $0x20] sm:$0xff]
      %v313 = vld [vmem:[%s307 + $0x28] sm:$0x3]
      %v314 = vld [vmem:[%s307 + $0x30] sm:$0xff]
      %v315 = vld [vmem:[%s307 + $0x38] sm:$0xff]
      %v316 = vld [vmem:[%s307 + $0x40] sm:$0x3]
      %v317 = vld [vmem:[%s307 + $0x48] sm:$0xff]
      %v318 = vld [vmem:[%s307 + $0x50] sm:$0xff]
      %v319 = vld [vmem:[%s307 + $0x58] sm:$0x3]
      %v320 = vld [vmem:[%s307 + $0x60] sm:$0xff]
      %v321 = vld [vmem:[%s307 + $0x68] sm:$0xff]
      %v322 = vld [vmem:[%s307 + $0x70] sm:$0x3]
      %v323 = vld [vmem:[%s307 + $0x78] sm:$0xff]
      %v324 = vld [vmem:[%s307 + $0x80] sm:$0xff]
      %v325 = vld [vmem:[%s307 + $0x88] sm:$0x3]
      %v326 = vld [vmem:[%s307 + $0x90] sm:$0xff]
      %v327 = vld [vmem:[%s307 + $0x98] sm:$0xff]
      %v328 = vld [vmem:[%s307 + $0xa0] sm:$0x3]
      %v329 = vld [vmem:[%s307 + $0xa8] sm:$0xff]
      %v330 = vld [vmem:[%s307 + $0xb0] sm:$0xff]
      %v331 = vld [vmem:[%s307 + $0xb8] sm:$0x3]
      %v332 = vld [vmem:[%s307 + $0xc0] sm:$0xff]
      %v333 = vld [vmem:[%s307 + $0xc8] sm:$0xff]
      %v334 = vld [vmem:[%s307 + $0xd0] sm:$0x3]
      %v335 = vld [vmem:[%s307 + $0xd8] sm:$0xff]
      %v336 = vld [vmem:[%s307 + $0xe0] sm:$0xff]
      %v337 = vld [vmem:[%s307 + $0xe8] sm:$0x3]
      %v338 = vmax.f32 %v308, 0.0
      %v339 = vmax.f32 %v309, 0.0
      %v340 = vmax.f32 %v310, 0.0
      %v341 = vmax.f32 %v311, 0.0
      %v342 = vmax.f32 %v312, 0.0
      %v343 = vmax.f32 %v313, 0.0
      %v344 = vmax.f32 %v314, 0.0
      %v345 = vmax.f32 %v315, 0.0
      %v346 = vmax.f32 %v316, 0.0
      %v347 = vmax.f32 %v317, 0.0
      %v348 = vmax.f32 %v318, 0.0
      %v349 = vmax.f32 %v319, 0.0
      %v350 = vmax.f32 %v320, 0.0
      %v351 = vmax.f32 %v321, 0.0
      %v352 = vmax.f32 %v322, 0.0
      %v353 = vmax.f32 %v323, 0.0
      %v354 = vmax.f32 %v324, 0.0
      %v355 = vmax.f32 %v325, 0.0
      %v356 = vmax.f32 %v326, 0.0
      %v357 = vmax.f32 %v327, 0.0
      %v358 = vmax.f32 %v328, 0.0
      %v359 = vmax.f32 %v329, 0.0
      %v360 = vmax.f32 %v330, 0.0
      %v361 = vmax.f32 %v331, 0.0
      %v362 = vmax.f32 %v332, 0.0
      %v363 = vmax.f32 %v333, 0.0
      %v364 = vmax.f32 %v334, 0.0
      %v365 = vmax.f32 %v335, 0.0
      %v366 = vmax.f32 %v336, 0.0
      %v367 = vmax.f32 %v337, 0.0
      %v368 = vpack.c.bf16 %v339, %v338
      %v369 = vpack.c.bf16 %v340, %v340
      %v370 = vpack.c.bf16 %v342, %v341
      %v371 = vpack.c.bf16 %v343, %v343
      %v372 = vpack.c.bf16 %v345, %v344
      %v373 = vpack.c.bf16 %v346, %v346
      %v374 = vpack.c.bf16 %v348, %v347
      %v375 = vpack.c.bf16 %v349, %v349
      %v376 = vpack.c.bf16 %v351, %v350
      %v377 = vpack.c.bf16 %v352, %v352
      %v378 = vpack.c.bf16 %v354, %v353
      %v379 = vpack.c.bf16 %v355, %v355
      %v380 = vpack.c.bf16 %v357, %v356
      %v381 = vpack.c.bf16 %v358, %v358
      %v382 = vpack.c.bf16 %v360, %v359
      %v383 = vpack.c.bf16 %v361, %v361
      %v384 = vpack.c.bf16 %v363, %v362
      %v385 = vpack.c.bf16 %v364, %v364
      %v386 = vpack.c.bf16 %v366, %v365
      %v387 = vpack.c.bf16 %v367, %v367
      %388 = vst [vmem:[#allocation2] sm:$0xf] 0
      %389 = vst [vmem:[#allocation2 + $0x4] sm:$0xf] 0
      %390 = vst [vmem:[#allocation2 + $0x8] sm:$0x1] 0
      %391 = vst [vmem:[#allocation2 + $0xc] sm:$0xf] 0
      %392 = vst [vmem:[#allocation2 + $0x10] sm:$0xf] 0
      %393 = vst [vmem:[#allocation2 + $0x14] sm:$0x1] 0
      %394 = vst [vmem:[#allocation2 + $0x18] sm:$0xf] 0
      %395 = vst [vmem:[#allocation2 + $0x1c] sm:$0xf] 0
      %396 = vst [vmem:[#allocation2 + $0x20] sm:$0x1] 0
      %397 = vst [vmem:[#allocation2 + $0x24] sm:$0xf] 0
      %398 = vst [vmem:[#allocation2 + $0x28] sm:$0xf] 0
      %399 = vst [vmem:[#allocation2 + $0x2c] sm:$0x1] 0
      %400 = vst [vmem:[#allocation2 + $0x30] sm:$0xf] 0
      %401 = vst [vmem:[#allocation2 + $0x34] sm:$0xf] 0
      %402 = vst [vmem:[#allocation2 + $0x38] sm:$0x1] 0
      %403 = vst [vmem:[#allocation2 + $0x3c] sm:$0xf] 0
      %404 = vst [vmem:[#allocation2 + $0x40] sm:$0xf] 0
      %405 = vst [vmem:[#allocation2 + $0x44] sm:$0x1] 0
      %406 = vst [vmem:[#allocation2 + $0x48] sm:$0xf] 0
      %407 = vst [vmem:[#allocation2 + $0x4c] sm:$0xf] 0
      %408 = vst [vmem:[#allocation2 + $0x50] sm:$0x1] 0
      %409 = vst [vmem:[#allocation2 + $0x54] sm:$0xf] 0
      %410 = vst [vmem:[#allocation2 + $0x58] sm:$0xf] 0
      %411 = vst [vmem:[#allocation2 + $0x5c] sm:$0x1] 0
      %412 = vst [vmem:[#allocation2 + $0x60] sm:$0xf] 0
      %413 = vst [vmem:[#allocation2 + $0x64] sm:$0xf] 0
      %414 = vst [vmem:[#allocation2 + $0x68] sm:$0x1] 0
      %415 = vst [vmem:[#allocation2 + $0x6c] sm:$0xf] 0
      %416 = vst [vmem:[#allocation2 + $0x70] sm:$0xf] 0
      %417 = vst [vmem:[#allocation2 + $0x74] sm:$0x1] 0
      %v438 = vunpack.c.l.b16 %v368
      %v439 = vunpack.c.h.b16 %v368
      %v440 = vunpack.c.l.b16 %v369
      %v441 = vunpack.c.l.b16 %v370
      %v442 = vunpack.c.h.b16 %v370
      %v443 = vunpack.c.l.b16 %v371
      %v444 = vunpack.c.l.b16 %v372
      %v445 = vunpack.c.h.b16 %v372
      %v446 = vunpack.c.l.b16 %v373
      %v447 = vunpack.c.l.b16 %v374
      %v448 = vunpack.c.h.b16 %v374
      %v449 = vunpack.c.l.b16 %v375
      %v450 = vunpack.c.l.b16 %v376
      %v451 = vunpack.c.h.b16 %v376
      %v452 = vunpack.c.l.b16 %v377
      %v453 = vunpack.c.l.b16 %v378
      %v454 = vunpack.c.h.b16 %v378
      %v455 = vunpack.c.l.b16 %v379
      %v456 = vunpack.c.l.b16 %v380
      %v457 = vunpack.c.h.b16 %v380
      %v458 = vunpack.c.l.b16 %v381
      %v459 = vunpack.c.l.b16 %v382
      %v460 = vunpack.c.h.b16 %v382
      %v461 = vunpack.c.l.b16 %v383
      %v462 = vunpack.c.l.b16 %v384
      %v463 = vunpack.c.h.b16 %v384
      %v464 = vunpack.c.l.b16 %v385
      %v465 = vunpack.c.l.b16 %v386
      %v466 = vunpack.c.h.b16 %v386
      %v467 = vunpack.c.l.b16 %v387
      %v468 = vpack.c.b16 %v438, %v438
      %v469 = vpack.c.b16 %v439, %v439
      %v470 = vpack.c.b16 %v440, %v440
      %v471 = vpack.c.b16 %v441, %v441
      %v472 = vpack.c.b16 %v442, %v442
      %v473 = vpack.c.b16 %v443, %v443
      %v474 = vpack.c.b16 %v444, %v444
      %v475 = vpack.c.b16 %v445, %v445
      %v476 = vpack.c.b16 %v446, %v446
      %v477 = vpack.c.b16 %v447, %v447
      %v478 = vpack.c.b16 %v448, %v448
      %v479 = vpack.c.b16 %v449, %v449
      %v480 = vpack.c.b16 %v450, %v450
      %v481 = vpack.c.b16 %v451, %v451
      %v482 = vpack.c.b16 %v452, %v452
      %v483 = vpack.c.b16 %v453, %v453
      %v484 = vpack.c.b16 %v454, %v454
      %v485 = vpack.c.b16 %v455, %v455
      %v486 = vpack.c.b16 %v456, %v456
      %v487 = vpack.c.b16 %v457, %v457
      %v488 = vpack.c.b16 %v458, %v458
      %v489 = vpack.c.b16 %v459, %v459
      %v490 = vpack.c.b16 %v460, %v460
      %v491 = vpack.c.b16 %v461, %v461
      %v492 = vpack.c.b16 %v462, %v462
      %v493 = vpack.c.b16 %v463, %v463
      %v494 = vpack.c.b16 %v464, %v464
      %v495 = vpack.c.b16 %v465, %v465
      %v496 = vpack.c.b16 %v466, %v466
      %v497 = vpack.c.b16 %v467, %v467
      %vm528 = vcmask 27648
      %529 = vst.msk [vmem:[#allocation2] sm:$0xf] %vm528, %v468
      %530 = vst.msk [vmem:[#allocation2 + $0x4] sm:$0xf] %vm528, %v469
      %vm531 = vcmask 24576
      %532 = vst.msk [vmem:[#allocation2 + $0x8] sm:$0x1] %vm531, %v470
      %533 = vst.msk [vmem:[#allocation2 + $0xc] sm:$0xf] %vm528, %v471
      %534 = vst.msk [vmem:[#allocation2 + $0x10] sm:$0xf] %vm528, %v472
      %535 = vst.msk [vmem:[#allocation2 + $0x14] sm:$0x1] %vm531, %v473
      %536 = vst.msk [vmem:[#allocation2 + $0x18] sm:$0xf] %vm528, %v474
      %537 = vst.msk [vmem:[#allocation2 + $0x1c] sm:$0xf] %vm528, %v475
      %538 = vst.msk [vmem:[#allocation2 + $0x20] sm:$0x1] %vm531, %v476
      %539 = vst.msk [vmem:[#allocation2 + $0x24] sm:$0xf] %vm528, %v477
      %540 = vst.msk [vmem:[#allocation2 + $0x28] sm:$0xf] %vm528, %v478
      %541 = vst.msk [vmem:[#allocation2 + $0x2c] sm:$0x1] %vm531, %v479
      %542 = vst.msk [vmem:[#allocation2 + $0x30] sm:$0xf] %vm528, %v480
      %543 = vst.msk [vmem:[#allocation2 + $0x34] sm:$0xf] %vm528, %v481
      %544 = vst.msk [vmem:[#allocation2 + $0x38] sm:$0x1] %vm531, %v482
      %545 = vst.msk [vmem:[#allocation2 + $0x3c] sm:$0xf] %vm528, %v483
      %546 = vst.msk [vmem:[#allocation2 + $0x40] sm:$0xf] %vm528, %v484
      %547 = vst.msk [vmem:[#allocation2 + $0x44] sm:$0x1] %vm531, %v485
      %548 = vst.msk [vmem:[#allocation2 + $0x48] sm:$0xf] %vm528, %v486
      %549 = vst.msk [vmem:[#allocation2 + $0x4c] sm:$0xf] %vm528, %v487
      %550 = vst.msk [vmem:[#allocation2 + $0x50] sm:$0x1] %vm531, %v488
      %551 = vst.msk [vmem:[#allocation2 + $0x54] sm:$0xf] %vm528, %v489
      %552 = vst.msk [vmem:[#allocation2 + $0x58] sm:$0xf] %vm528, %v490
      %553 = vst.msk [vmem:[#allocation2 + $0x5c] sm:$0x1] %vm531, %v491
      %554 = vst.msk [vmem:[#allocation2 + $0x60] sm:$0xf] %vm528, %v492
      %555 = vst.msk [vmem:[#allocation2 + $0x64] sm:$0xf] %vm528, %v493
      %556 = vst.msk [vmem:[#allocation2 + $0x68] sm:$0x1] %vm531, %v494
      %557 = vst.msk [vmem:[#allocation2 + $0x6c] sm:$0xf] %vm528, %v495
      %558 = vst.msk [vmem:[#allocation2 + $0x70] sm:$0xf] %vm528, %v496
      %559 = vst.msk [vmem:[#allocation2 + $0x74] sm:$0x1] %vm531, %v497
      %v560 = vld [vmem:[#allocation2] sm:$0xf]
      %v561 = vld [vmem:[#allocation2 + $0x4] sm:$0xf]
      %v562 = vld [vmem:[#allocation2 + $0x8] sm:$0x1]
      %v563 = vld [vmem:[#allocation2 + $0xc] sm:$0xf]
      %v564 = vld [vmem:[#allocation2 + $0x10] sm:$0xf]
      %v565 = vld [vmem:[#allocation2 + $0x14] sm:$0x1]
      %v566 = vld [vmem:[#allocation2 + $0x18] sm:$0xf]
      %v567 = vld [vmem:[#allocation2 + $0x1c] sm:$0xf]
      %v568 = vld [vmem:[#allocation2 + $0x20] sm:$0x1]
      %v569 = vld [vmem:[#allocation2 + $0x24] sm:$0xf]
      %v570 = vld [vmem:[#allocation2 + $0x28] sm:$0xf]
      %v571 = vld [vmem:[#allocation2 + $0x2c] sm:$0x1]
      %v572 = vld [vmem:[#allocation2 + $0x30] sm:$0xf]
      %v573 = vld [vmem:[#allocation2 + $0x34] sm:$0xf]
      %v574 = vld [vmem:[#allocation2 + $0x38] sm:$0x1]
      %v575 = vld [vmem:[#allocation2 + $0x3c] sm:$0xf]
      %v576 = vld [vmem:[#allocation2 + $0x40] sm:$0xf]
      %v577 = vld [vmem:[#allocation2 + $0x44] sm:$0x1]
      %v578 = vld [vmem:[#allocation2 + $0x48] sm:$0xf]
      %v579 = vld [vmem:[#allocation2 + $0x4c] sm:$0xf]
      %v580 = vld [vmem:[#allocation2 + $0x50] sm:$0x1]
      %v581 = vld [vmem:[#allocation2 + $0x54] sm:$0xf]
      %v582 = vld [vmem:[#allocation2 + $0x58] sm:$0xf]
      %v583 = vld [vmem:[#allocation2 + $0x5c] sm:$0x1]
      %v584 = vld [vmem:[#allocation2 + $0x60] sm:$0xf]
      %v585 = vld [vmem:[#allocation2 + $0x64] sm:$0xf]
      %v586 = vld [vmem:[#allocation2 + $0x68] sm:$0x1]
      %v587 = vld [vmem:[#allocation2 + $0x6c] sm:$0xf]
      %v588 = vld [vmem:[#allocation2 + $0x70] sm:$0xf]
      %v589 = vld [vmem:[#allocation2 + $0x74] sm:$0x1]
      %v590 = vld [vmem:[%s1] sm:$0xf]
      %v591 = vld [vmem:[%s1 + $0x4] sm:$0xf]
      %v592 = vld [vmem:[%s1 + $0x8] sm:$0xf]
      %v593 = vld [vmem:[%s1 + $0xc] sm:$0xf]
      %v594 = vld [vmem:[%s1 + $0x10] sm:$0xf]
      %v595 = vld [vmem:[%s1 + $0x14] sm:$0xf]
      %v596 = vld [vmem:[%s1 + $0x18] sm:$0xf]
      %v597 = vld [vmem:[%s1 + $0x1c] sm:$0xf]
      %v598 = vld [vmem:[%s1 + $0x20] sm:$0xf]
      %v599 = vld [vmem:[%s1 + $0x24] sm:$0xf]
      %v600 = vld [vmem:[%s1 + $0x28] sm:$0xf]
      %v601 = vld [vmem:[%s1 + $0x2c] sm:$0xf]
      %v602 = vld [vmem:[%s1 + $0x30] sm:$0xf]
      %v603 = vld [vmem:[%s1 + $0x34] sm:$0xf]
      %v604 = vld [vmem:[%s1 + $0x38] sm:$0xf]
      %v605 = vld [vmem:[%s1 + $0x3c] sm:$0xf]
      %vm606 = vsmask.f32 3328
      %vm607 = vsmask.f32 7440
      %vm608 = vmor %vm606, %vm607
      %v610 = vshrl.u32 %v560, 16
      %v612 = vrot.slane %v610, 4
      %v613 = vshll.u32 %v560, 16
      %v615 = vrot.slane %v613, 5
      %v616 = vor.u32 %v612, %v615
      %v617 = vrot.slane %v616, 4
      %v619 = vshll.u32 %v561, 16
      %v621 = vrot.slane %v619, 5
      %v622 = vsel %vm608, %v617, %v621
      %v623 = vshrl.u32 %v561, 16
      %v625 = vrot.slane %v623, 4
      %v626 = vor.u32 %v625, %v621
      %v627 = vrot.slane %v626, 4
      %v629 = vshll.u32 %v562, 16
      %v631 = vrot.slane %v629, 5
      %v632 = vsel %vm608, %v627, %v631
      %v634 = vshrl.u32 %v563, 16
      %v636 = vrot.slane %v634, 4
      %v637 = vshll.u32 %v563, 16
      %v639 = vrot.slane %v637, 5
      %v640 = vor.u32 %v636, %v639
      %v641 = vrot.slane %v640, 4
      %v643 = vshll.u32 %v564, 16
      %v645 = vrot.slane %v643, 5
      %v646 = vsel %vm608, %v641, %v645
      %v647 = vshrl.u32 %v564, 16
      %v649 = vrot.slane %v647, 4
      %v650 = vor.u32 %v649, %v645
      %v651 = vrot.slane %v650, 4
      %v653 = vshll.u32 %v565, 16
      %v655 = vrot.slane %v653, 5
      %v656 = vsel %vm608, %v651, %v655
      %v658 = vshrl.u32 %v566, 16
      %v660 = vrot.slane %v658, 4
      %v661 = vshll.u32 %v566, 16
      %v663 = vrot.slane %v661, 5
      %v664 = vor.u32 %v660, %v663
      %v665 = vrot.slane %v664, 4
      %v667 = vshll.u32 %v567, 16
      %v669 = vrot.slane %v667, 5
      %v670 = vsel %vm608, %v665, %v669
      %v671 = vshrl.u32 %v567, 16
      %v673 = vrot.slane %v671, 4
      %v674 = vor.u32 %v673, %v669
      %v675 = vrot.slane %v674, 4
      %v677 = vshll.u32 %v568, 16
      %v679 = vrot.slane %v677, 5
      %v680 = vsel %vm608, %v675, %v679
      %v682 = vshrl.u32 %v569, 16
      %v684 = vrot.slane %v682, 4
      %v685 = vshll.u32 %v569, 16
      %v687 = vrot.slane %v685, 5
      %v688 = vor.u32 %v684, %v687
      %v689 = vrot.slane %v688, 4
      %v691 = vshll.u32 %v570, 16
      %v693 = vrot.slane %v691, 5
      %v694 = vsel %vm608, %v689, %v693
      %v695 = vshrl.u32 %v570, 16
      %v697 = vrot.slane %v695, 4
      %v698 = vor.u32 %v697, %v693
      %v699 = vrot.slane %v698, 4
      %v701 = vshll.u32 %v571, 16
      %v703 = vrot.slane %v701, 5
      %v704 = vsel %vm608, %v699, %v703
      %v706 = vshrl.u32 %v572, 16
      %v708 = vrot.slane %v706, 4
      %v709 = vshll.u32 %v572, 16
      %v711 = vrot.slane %v709, 5
      %v712 = vor.u32 %v708, %v711
      %v713 = vrot.slane %v712, 4
      %v715 = vshll.u32 %v573, 16
      %v717 = vrot.slane %v715, 5
      %v718 = vsel %vm608, %v713, %v717
      %v719 = vshrl.u32 %v573, 16
      %v721 = vrot.slane %v719, 4
      %v722 = vor.u32 %v721, %v717
      %v723 = vrot.slane %v722, 4
      %v725 = vshll.u32 %v574, 16
      %v727 = vrot.slane %v725, 5
      %v728 = vsel %vm608, %v723, %v727
      %v730 = vshrl.u32 %v575, 16
      %v732 = vrot.slane %v730, 4
      %v733 = vshll.u32 %v575, 16
      %v735 = vrot.slane %v733, 5
      %v736 = vor.u32 %v732, %v735
      %v737 = vrot.slane %v736, 4
      %v739 = vshll.u32 %v576, 16
      %v741 = vrot.slane %v739, 5
      %v742 = vsel %vm608, %v737, %v741
      %v743 = vshrl.u32 %v576, 16
      %v745 = vrot.slane %v743, 4
      %v746 = vor.u32 %v745, %v741
      %v747 = vrot.slane %v746, 4
      %v749 = vshll.u32 %v577, 16
      %v751 = vrot.slane %v749, 5
      %v752 = vsel %vm608, %v747, %v751
      %v754 = vshrl.u32 %v578, 16
      %v756 = vrot.slane %v754, 4
      %v757 = vshll.u32 %v578, 16
      %v759 = vrot.slane %v757, 5
      %v760 = vor.u32 %v756, %v759
      %v761 = vrot.slane %v760, 4
      %v763 = vshll.u32 %v579, 16
      %v765 = vrot.slane %v763, 5
      %v766 = vsel %vm608, %v761, %v765
      %v767 = vshrl.u32 %v579, 16
      %v769 = vrot.slane %v767, 4
      %v770 = vor.u32 %v769, %v765
      %v771 = vrot.slane %v770, 4
      %v773 = vshll.u32 %v580, 16
      %v775 = vrot.slane %v773, 5
      %v776 = vsel %vm608, %v771, %v775
      %v778 = vshrl.u32 %v581, 16
      %v780 = vrot.slane %v778, 4
      %v781 = vshll.u32 %v581, 16
      %v783 = vrot.slane %v781, 5
      %v784 = vor.u32 %v780, %v783
      %v785 = vrot.slane %v784, 4
      %v787 = vshll.u32 %v582, 16
      %v789 = vrot.slane %v787, 5
      %v790 = vsel %vm608, %v785, %v789
      %v791 = vshrl.u32 %v582, 16
      %v793 = vrot.slane %v791, 4
      %v794 = vor.u32 %v793, %v789
      %v795 = vrot.slane %v794, 4
      %v797 = vshll.u32 %v583, 16
      %v799 = vrot.slane %v797, 5
      %v800 = vsel %vm608, %v795, %v799
      %s801 = scalar_lea.vmem %s1, 64
      %v802 = vld [vmem:[%s801] sm:$0xf]
      %v803 = vld [vmem:[%s801 + $0x4] sm:$0xf]
      %v804 = vld [vmem:[%s801 + $0x8] sm:$0xf]
      %v805 = vld [vmem:[%s801 + $0xc] sm:$0xf]
      %v806 = vld [vmem:[%s801 + $0x10] sm:$0xf]
      %v807 = vld [vmem:[%s801 + $0x14] sm:$0xf]
      %v808 = vld [vmem:[%s801 + $0x18] sm:$0xf]
      %v809 = vld [vmem:[%s801 + $0x1c] sm:$0xf]
      %v810 = vld [vmem:[%s801 + $0x20] sm:$0xf]
      %v811 = vld [vmem:[%s801 + $0x24] sm:$0xf]
      %v812 = vld [vmem:[%s801 + $0x28] sm:$0xf]
      %v813 = vld [vmem:[%s801 + $0x2c] sm:$0xf]
      %v814 = vld [vmem:[%s801 + $0x30] sm:$0xf]
      %v815 = vld [vmem:[%s801 + $0x34] sm:$0xf]
      %v816 = vld [vmem:[%s801 + $0x38] sm:$0xf]
      %v817 = vld [vmem:[%s801 + $0x3c] sm:$0xf]
      %v818 = vunpack.c.l.b16 %v622
      %v819 = vunpack.c.l.b16 %v632
      %v820 = vunpack.c.l.b16 %v646
      %v821 = vunpack.c.l.b16 %v656
      %v822 = vunpack.c.l.b16 %v670
      %v823 = vunpack.c.l.b16 %v680
      %v824 = vunpack.c.l.b16 %v694
      %v825 = vunpack.c.l.b16 %v704
      %v826 = vunpack.c.l.b16 %v718
      %v827 = vunpack.c.l.b16 %v728
      %v828 = vunpack.c.l.b16 %v742
      %v829 = vunpack.c.l.b16 %v752
      %v830 = vunpack.c.l.b16 %v766
      %v831 = vunpack.c.l.b16 %v776
      %v832 = vunpack.c.l.b16 %v790
      %v833 = vunpack.c.l.b16 %v800
      %v834 = vpack.c.b16 %v819, %v818
      %v835 = vpack.c.b16 %v821, %v820
      %v836 = vpack.c.b16 %v823, %v822
      %v837 = vpack.c.b16 %v825, %v824
      %v838 = vpack.c.b16 %v827, %v826
      %v839 = vpack.c.b16 %v829, %v828
      %v840 = vpack.c.b16 %v831, %v830
      %v841 = vpack.c.b16 %v833, %v832
      %v866 = vunpack.c.l.b16 %v802
      %v867 = vunpack.c.l.b16 %v803
      %v868 = vunpack.c.l.b16 %v804
      %v869 = vunpack.c.l.b16 %v805
      %v870 = vunpack.c.l.b16 %v806
      %v871 = vunpack.c.l.b16 %v807
      %v872 = vunpack.c.l.b16 %v808
      %v873 = vunpack.c.l.b16 %v809
      %v874 = vunpack.c.l.b16 %v810
      %v875 = vunpack.c.l.b16 %v811
      %v876 = vunpack.c.l.b16 %v812
      %v877 = vunpack.c.l.b16 %v813
      %v878 = vunpack.c.l.b16 %v814
      %v879 = vunpack.c.l.b16 %v815
      %v880 = vunpack.c.l.b16 %v816
      %v881 = vunpack.c.l.b16 %v817
      %v882 = vpack.c.b16 %v867, %v866
      %v883 = vpack.c.b16 %v869, %v868
      %v884 = vpack.c.b16 %v871, %v870
      %v885 = vpack.c.b16 %v873, %v872
      %v886 = vpack.c.b16 %v875, %v874
      %v887 = vpack.c.b16 %v877, %v876
      %v888 = vpack.c.b16 %v879, %v878
      %v889 = vpack.c.b16 %v881, %v880
      %898 = vmatprep.subr.bf16.mxu0 0
      %899 = vmatpush1.bf16.msra.mxu0 %v882
      %900 = vmatprep.subr.bf16.mxu0 0
      %901 = vmatpush1.bf16.msra.mxu0 %v883
      %902 = vmatprep.subr.bf16.mxu0 0
      %903 = vmatpush1.bf16.msra.mxu0 %v884
      %904 = vmatprep.subr.bf16.mxu0 0
      %905 = vmatpush1.bf16.msra.mxu0 %v885
      %906 = vmatprep.subr.bf16.mxu0 0
      %907 = vmatpush1.bf16.msra.mxu0 %v886
      %908 = vmatprep.subr.bf16.mxu0 0
      %909 = vmatpush1.bf16.msra.mxu0 %v887
      %910 = vmatprep.subr.bf16.mxu0 0
      %911 = vmatpush1.bf16.msra.mxu0 %v888
      %912 = vmatprep.subr.bf16.mxu0 0
      %913 = vmatpush1.bf16.msra.mxu0 %v889
      %914 = vmatprep.subr.bf16.mxu0 0
      %915 = vmatpush1.bf16.msra.mxu0 0
      %916 = vmatprep.subr.bf16.mxu0 0
      %917 = vmatpush1.bf16.msra.mxu0 0
      %918 = vmatprep.subr.bf16.mxu0 0
      %919 = vmatpush1.bf16.msra.mxu0 0
      %920 = vmatprep.subr.bf16.mxu0 0
      %921 = vmatpush1.bf16.msra.mxu0 0
      %922 = vmatprep.subr.bf16.mxu0 0
      %923 = vmatpush1.bf16.msra.mxu0 0
      %924 = vmatprep.subr.bf16.mxu0 0
      %925 = vmatpush1.bf16.msra.mxu0 0
      %926 = vmatprep.subr.bf16.mxu0 0
      %927 = vmatpush1.bf16.msra.mxu0 0
      %928 = vmatprep.subr.bf16.mxu0 0
      %929 = vmatpush1.bf16.msra.mxu0 0
      %930 = vmatprep.mubr.bf16.mxu0 0
      %931 = vmatmul.mubr.bf16.gmra.mrb[0].mxu0 %v834
      %v932 = vpop.f32.mrb[0].mxu0
      %v933 = vadd.f32 0.0, %v932
      %v934 = vpop.f32.mrb[0].mxu0
      %v935 = vpop.f32.mrb[0].mxu0
      %v936 = vadd.f32 0.0, %v935
      %v937 = vpop.f32.mrb[0].mxu0
      %938 = vmatprep.mubr.bf16.mxu0 0
      %939 = vmatmul.mubr.bf16.gmra.mrb[0].mxu0 %v835
      %v940 = vpop.f32.mrb[0].mxu0
      %v941 = vadd.f32 0.0, %v940
      %v942 = vpop.f32.mrb[0].mxu0
      %v943 = vpop.f32.mrb[0].mxu0
      %v944 = vadd.f32 0.0, %v943
      %v945 = vpop.f32.mrb[0].mxu0
      %946 = vmatprep.mubr.bf16.mxu0 0
      %947 = vmatmul.mubr.bf16.gmra.mrb[0].mxu0 %v836
      %v948 = vpop.f32.mrb[0].mxu0
      %v949 = vadd.f32 0.0, %v948
      %v950 = vpop.f32.mrb[0].mxu0
      %v951 = vpop.f32.mrb[0].mxu0
      %v952 = vadd.f32 0.0, %v951
      %v953 = vpop.f32.mrb[0].mxu0
      %954 = vmatprep.mubr.bf16.mxu0 0
      %955 = vmatmul.mubr.bf16.gmra.mrb[0].mxu0 %v837
      %v956 = vpop.f32.mrb[0].mxu0
      %v957 = vadd.f32 0.0, %v956
      %v958 = vpop.f32.mrb[0].mxu0
      %v959 = vpop.f32.mrb[0].mxu0
      %v960 = vadd.f32 0.0, %v959
      %v961 = vpop.f32.mrb[0].mxu0
      %962 = vmatprep.mubr.bf16.mxu0 0
      %963 = vmatmul.mubr.bf16.gmra.mrb[0].mxu0 %v838
      %v964 = vpop.f32.mrb[0].mxu0
      %v965 = vadd.f32 0.0, %v964
      %v966 = vpop.f32.mrb[0].mxu0
      %v967 = vpop.f32.mrb[0].mxu0
      %v968 = vadd.f32 0.0, %v967
      %v969 = vpop.f32.mrb[0].mxu0
      %970 = vmatprep.mubr.bf16.mxu0 0
      %971 = vmatmul.mubr.bf16.gmra.mrb[0].mxu0 %v839
      %v972 = vpop.f32.mrb[0].mxu0
      %v973 = vadd.f32 0.0, %v972
      %v974 = vpop.f32.mrb[0].mxu0
      %v975 = vpop.f32.mrb[0].mxu0
      %v976 = vadd.f32 0.0, %v975
      %v977 = vpop.f32.mrb[0].mxu0
      %978 = vmatprep.mubr.bf16.mxu0 0
      %979 = vmatmul.mubr.bf16.gmra.mrb[0].mxu0 %v840
      %v980 = vpop.f32.mrb[0].mxu0
      %v981 = vadd.f32 0.0, %v980
      %v982 = vpop.f32.mrb[0].mxu0
      %v983 = vpop.f32.mrb[0].mxu0
      %v984 = vadd.f32 0.0, %v983
      %v985 = vpop.f32.mrb[0].mxu0
      %986 = vmatprep.mubr.bf16.mxu0 0
      %987 = vmatmul.mubr.bf16.gmra.mrb[0].mxu0 %v841
      %v988 = vpop.f32.mrb[0].mxu0
      %v989 = vadd.f32 0.0, %v988
      %v990 = vpop.f32.mrb[0].mxu0
      %v991 = vpop.f32.mrb[0].mxu0
      %v992 = vadd.f32 0.0, %v991
      %v993 = vpop.f32.mrb[0].mxu0
      %994 = vdwg.mxu0
      %v1011 = vunpack.c.l.b16 %v560
      %v1012 = vunpack.c.l.b16 %v561
      %v1013 = vunpack.c.l.b16 %v563
      %v1014 = vunpack.c.l.b16 %v564
      %v1015 = vunpack.c.l.b16 %v566
      %v1016 = vunpack.c.l.b16 %v567
      %v1017 = vunpack.c.l.b16 %v569
      %v1018 = vunpack.c.l.b16 %v570
      %v1019 = vunpack.c.l.b16 %v572
      %v1020 = vunpack.c.l.b16 %v573
      %v1021 = vunpack.c.l.b16 %v575
      %v1022 = vunpack.c.l.b16 %v576
      %v1023 = vunpack.c.l.b16 %v578
      %v1024 = vunpack.c.l.b16 %v579
      %v1025 = vunpack.c.l.b16 %v581
      %v1026 = vunpack.c.l.b16 %v582
      %v1027 = vpack.c.b16 %v1012, %v1011
      %v1028 = vpack.c.b16 %v1014, %v1013
      %v1029 = vpack.c.b16 %v1016, %v1015
      %v1030 = vpack.c.b16 %v1018, %v1017
      %v1031 = vpack.c.b16 %v1020, %v1019
      %v1032 = vpack.c.b16 %v1022, %v1021
      %v1033 = vpack.c.b16 %v1024, %v1023
      %v1034 = vpack.c.b16 %v1026, %v1025
      %v1059 = vunpack.c.l.b16 %v590
      %v1060 = vunpack.c.l.b16 %v591
      %v1061 = vunpack.c.l.b16 %v592
      %v1062 = vunpack.c.l.b16 %v593
      %v1063 = vunpack.c.l.b16 %v594
      %v1064 = vunpack.c.l.b16 %v595
      %v1065 = vunpack.c.l.b16 %v596
      %v1066 = vunpack.c.l.b16 %v597
      %v1067 = vunpack.c.l.b16 %v598
      %v1068 = vunpack.c.l.b16 %v599
      %v1069 = vunpack.c.l.b16 %v600
      %v1070 = vunpack.c.l.b16 %v601
      %v1071 = vunpack.c.l.b16 %v602
      %v1072 = vunpack.c.l.b16 %v603
      %v1073 = vunpack.c.l.b16 %v604
      %v1074 = vunpack.c.l.b16 %v605
      %v1075 = vpack.c.b16 %v1060, %v1059
      %v1076 = vpack.c.b16 %v1062, %v1061
      %v1077 = vpack.c.b16 %v1064, %v1063
      %v1078 = vpack.c.b16 %v1066, %v1065
      %v1079 = vpack.c.b16 %v1068, %v1067
      %v1080 = vpack.c.b16 %v1070, %v1069
      %v1081 = vpack.c.b16 %v1072, %v1071
      %v1082 = vpack.c.b16 %v1074, %v1073
      %1091 = vmatprep.subr.bf16.mxu0 0
      %1092 = vmatpush1.bf16.msra.mxu0 %v1075
      %1093 = vmatprep.subr.bf16.mxu0 0
      %1094 = vmatpush1.bf16.msra.mxu0 %v1076
      %1095 = vmatprep.subr.bf16.mxu0 0
      %1096 = vmatpush1.bf16.msra.mxu0 %v1077
      %1097 = vmatprep.subr.bf16.mxu0 0
      %1098 = vmatpush1.bf16.msra.mxu0 %v1078
      %1099 = vmatprep.subr.bf16.mxu0 0
      %1100 = vmatpush1.bf16.msra.mxu0 %v1079
      %1101 = vmatprep.subr.bf16.mxu0 0
      %1102 = vmatpush1.bf16.msra.mxu0 %v1080
      %1103 = vmatprep.subr.bf16.mxu0 0
      %1104 = vmatpush1.bf16.msra.mxu0 %v1081
      %1105 = vmatprep.subr.bf16.mxu0 0
      %1106 = vmatpush1.bf16.msra.mxu0 %v1082
      %1107 = vmatprep.subr.bf16.mxu0 0
      %1108 = vmatpush1.bf16.msra.mxu0 0
      %1109 = vmatprep.subr.bf16.mxu0 0
      %1110 = vmatpush1.bf16.msra.mxu0 0
      %1111 = vmatprep.subr.bf16.mxu0 0
      %1112 = vmatpush1.bf16.msra.mxu0 0
      %1113 = vmatprep.subr.bf16.mxu0 0
      %1114 = vmatpush1.bf16.msra.mxu0 0
      %1115 = vmatprep.subr.bf16.mxu0 0
      %1116 = vmatpush1.bf16.msra.mxu0 0
      %1117 = vmatprep.subr.bf16.mxu0 0
      %1118 = vmatpush1.bf16.msra.mxu0 0
      %1119 = vmatprep.subr.bf16.mxu0 0
      %1120 = vmatpush1.bf16.msra.mxu0 0
      %1121 = vmatprep.subr.bf16.mxu0 0
      %1122 = vmatpush1.bf16.msra.mxu0 0
      %1123 = vmatprep.mubr.bf16.mxu0 0
      %1124 = vmatmul.mubr.bf16.gmra.mrb[0].mxu0 %v1027
      %v1125 = vpop.f32.mrb[0].mxu0
      %v1126 = vadd.f32 %v933, %v1125
      %v1127 = vpop.f32.mrb[0].mxu0
      %v1128 = vpop.f32.mrb[0].mxu0
      %v1129 = vadd.f32 %v936, %v1128
      %v1130 = vpop.f32.mrb[0].mxu0
      %1131 = vmatprep.mubr.bf16.mxu0 0
      %1132 = vmatmul.mubr.bf16.gmra.mrb[0].mxu0 %v1028
      %v1133 = vpop.f32.mrb[0].mxu0
      %v1134 = vadd.f32 %v941, %v1133
      %v1135 = vpop.f32.mrb[0].mxu0
      %v1136 = vpop.f32.mrb[0].mxu0
      %v1137 = vadd.f32 %v944, %v1136
      %v1138 = vpop.f32.mrb[0].mxu0
      %1139 = vmatprep.mubr.bf16.mxu0 0
      %1140 = vmatmul.mubr.bf16.gmra.mrb[0].mxu0 %v1029
      %v1141 = vpop.f32.mrb[0].mxu0
      %v1142 = vadd.f32 %v949, %v1141
      %v1143 = vpop.f32.mrb[0].mxu0
      %v1144 = vpop.f32.mrb[0].mxu0
      %v1145 = vadd.f32 %v952, %v1144
      %v1146 = vpop.f32.mrb[0].mxu0
      %1147 = vmatprep.mubr.bf16.mxu0 0
      %1148 = vmatmul.mubr.bf16.gmra.mrb[0].mxu0 %v1030
      %v1149 = vpop.f32.mrb[0].mxu0
      %v1150 = vadd.f32 %v957, %v1149
      %v1151 = vpop.f32.mrb[0].mxu0
      %v1152 = vpop.f32.mrb[0].mxu0
      %v1153 = vadd.f32 %v960, %v1152
      %v1154 = vpop.f32.mrb[0].mxu0
      %1155 = vmatprep.mubr.bf16.mxu0 0
      %1156 = vmatmul.mubr.bf16.gmra.mrb[0].mxu0 %v1031
      %v1157 = vpop.f32.mrb[0].mxu0
      %v1158 = vadd.f32 %v965, %v1157
      %v1159 = vpop.f32.mrb[0].mxu0
      %v1160 = vpop.f32.mrb[0].mxu0
      %v1161 = vadd.f32 %v968, %v1160
      %v1162 = vpop.f32.mrb[0].mxu0
      %1163 = vmatprep.mubr.bf16.mxu0 0
      %1164 = vmatmul.mubr.bf16.gmra.mrb[0].mxu0 %v1032
      %v1165 = vpop.f32.mrb[0].mxu0
      %v1166 = vadd.f32 %v973, %v1165
      %v1167 = vpop.f32.mrb[0].mxu0
      %v1168 = vpop.f32.mrb[0].mxu0
      %v1169 = vadd.f32 %v976, %v1168
      %v1170 = vpop.f32.mrb[0].mxu0
      %1171 = vmatprep.mubr.bf16.mxu0 0
      %1172 = vmatmul.mubr.bf16.gmra.mrb[0].mxu0 %v1033
      %v1173 = vpop.f32.mrb[0].mxu0
      %v1174 = vadd.f32 %v981, %v1173
      %v1175 = vpop.f32.mrb[0].mxu0
      %v1176 = vpop.f32.mrb[0].mxu0
      %v1177 = vadd.f32 %v984, %v1176
      %v1178 = vpop.f32.mrb[0].mxu0
      %1179 = vmatprep.mubr.bf16.mxu0 0
      %1180 = vmatmul.mubr.bf16.gmra.mrb[0].mxu0 %v1034
      %v1181 = vpop.f32.mrb[0].mxu0
      %v1182 = vadd.f32 %v989, %v1181
      %v1183 = vpop.f32.mrb[0].mxu0
      %v1184 = vpop.f32.mrb[0].mxu0
      %v1185 = vadd.f32 %v992, %v1184
      %v1186 = vpop.f32.mrb[0].mxu0
      %1187 = vdwg.mxu0
      %vm1196 = vcmask 1042432
      %vm1197 = vcmask 1046532
      %vm1198 = vmor %vm1196, %vm1197
      %v1199 = vrot.slane %v560, 5
      %v1200 = vrot.slane %v1199, 4
      %v1201 = vrot.slane %v561, 5
      %v1202 = vsel %vm1198, %v1200, %v1201
      %v1203 = vrot.slane %v1201, 4
      %v1204 = vrot.slane %v562, 5
      %v1205 = vsel %vm1198, %v1203, %v1204
      %v1206 = vrot.slane %v563, 5
      %v1207 = vrot.slane %v1206, 4
      %v1208 = vrot.slane %v564, 5
      %v1209 = vsel %vm1198, %v1207, %v1208
      %v1210 = vrot.slane %v1208, 4
      %v1211 = vrot.slane %v565, 5
      %v1212 = vsel %vm1198, %v1210, %v1211
      %v1213 = vrot.slane %v566, 5
      %v1214 = vrot.slane %v1213, 4
      %v1215 = vrot.slane %v567, 5
      %v1216 = vsel %vm1198, %v1214, %v1215
      %v1217 = vrot.slane %v1215, 4
      %v1218 = vrot.slane %v568, 5
      %v1219 = vsel %vm1198, %v1217, %v1218
      %v1220 = vrot.slane %v569, 5
      %v1221 = vrot.slane %v1220, 4
      %v1222 = vrot.slane %v570, 5
      %v1223 = vsel %vm1198, %v1221, %v1222
      %v1224 = vrot.slane %v1222, 4
      %v1225 = vrot.slane %v571, 5
      %v1226 = vsel %vm1198, %v1224, %v1225
      %v1227 = vrot.slane %v572, 5
      %v1228 = vrot.slane %v1227, 4
      %v1229 = vrot.slane %v573, 5
      %v1230 = vsel %vm1198, %v1228, %v1229
      %v1231 = vrot.slane %v1229, 4
      %v1232 = vrot.slane %v574, 5
      %v1233 = vsel %vm1198, %v1231, %v1232
      %v1234 = vrot.slane %v575, 5
      %v1235 = vrot.slane %v1234, 4
      %v1236 = vrot.slane %v576, 5
      %v1237 = vsel %vm1198, %v1235, %v1236
      %v1238 = vrot.slane %v1236, 4
      %v1239 = vrot.slane %v577, 5
      %v1240 = vsel %vm1198, %v1238, %v1239
      %v1241 = vrot.slane %v578, 5
      %v1242 = vrot.slane %v1241, 4
      %v1243 = vrot.slane %v579, 5
      %v1244 = vsel %vm1198, %v1242, %v1243
      %v1245 = vrot.slane %v1243, 4
      %v1246 = vrot.slane %v580, 5
      %v1247 = vsel %vm1198, %v1245, %v1246
      %v1248 = vrot.slane %v581, 5
      %v1249 = vrot.slane %v1248, 4
      %v1250 = vrot.slane %v582, 5
      %v1251 = vsel %vm1198, %v1249, %v1250
      %v1252 = vrot.slane %v1250, 4
      %v1253 = vrot.slane %v583, 5
      %v1254 = vsel %vm1198, %v1252, %v1253
      %s1255 = scalar_lea.vmem %s1, 128
      %v1256 = vld [vmem:[%s1255] sm:$0xf]
      %v1257 = vld [vmem:[%s1255 + $0x4] sm:$0xf]
      %v1258 = vld [vmem:[%s1255 + $0x8] sm:$0xf]
      %v1259 = vld [vmem:[%s1255 + $0xc] sm:$0xf]
      %v1260 = vld [vmem:[%s1255 + $0x10] sm:$0xf]
      %v1261 = vld [vmem:[%s1255 + $0x14] sm:$0xf]
      %v1262 = vld [vmem:[%s1255 + $0x18] sm:$0xf]
      %v1263 = vld [vmem:[%s1255 + $0x1c] sm:$0xf]
      %v1264 = vld [vmem:[%s1255 + $0x20] sm:$0xf]
      %v1265 = vld [vmem:[%s1255 + $0x24] sm:$0xf]
      %v1266 = vld [vmem:[%s1255 + $0x28] sm:$0xf]
      %v1267 = vld [vmem:[%s1255 + $0x2c] sm:$0xf]
      %v1268 = vld [vmem:[%s1255 + $0x30] sm:$0xf]
      %v1269 = vld [vmem:[%s1255 + $0x34] sm:$0xf]
      %v1270 = vld [vmem:[%s1255 + $0x38] sm:$0xf]
      %v1271 = vld [vmem:[%s1255 + $0x3c] sm:$0xf]
      %v1272 = vunpack.c.l.b16 %v1202
      %v1273 = vunpack.c.l.b16 %v1205
      %v1274 = vunpack.c.l.b16 %v1209
      %v1275 = vunpack.c.l.b16 %v1212
      %v1276 = vunpack.c.l.b16 %v1216
      %v1277 = vunpack.c.l.b16 %v1219
      %v1278 = vunpack.c.l.b16 %v1223
      %v1279 = vunpack.c.l.b16 %v1226
      %v1280 = vunpack.c.l.b16 %v1230
      %v1281 = vunpack.c.l.b16 %v1233
      %v1282 = vunpack.c.l.b16 %v1237
      %v1283 = vunpack.c.l.b16 %v1240
      %v1284 = vunpack.c.l.b16 %v1244
      %v1285 = vunpack.c.l.b16 %v1247
      %v1286 = vunpack.c.l.b16 %v1251
      %v1287 = vunpack.c.l.b16 %v1254
      %v1288 = vpack.c.b16 %v1273, %v1272
      %v1289 = vpack.c.b16 %v1275, %v1274
      %v1290 = vpack.c.b16 %v1277, %v1276
      %v1291 = vpack.c.b16 %v1279, %v1278
      %v1292 = vpack.c.b16 %v1281, %v1280
      %v1293 = vpack.c.b16 %v1283, %v1282
      %v1294 = vpack.c.b16 %v1285, %v1284
      %v1295 = vpack.c.b16 %v1287, %v1286
      %v1320 = vunpack.c.l.b16 %v1256
      %v1321 = vunpack.c.l.b16 %v1257
      %v1322 = vunpack.c.l.b16 %v1258
      %v1323 = vunpack.c.l.b16 %v1259
      %v1324 = vunpack.c.l.b16 %v1260
      %v1325 = vunpack.c.l.b16 %v1261
      %v1326 = vunpack.c.l.b16 %v1262
      %v1327 = vunpack.c.l.b16 %v1263
      %v1328 = vunpack.c.l.b16 %v1264
      %v1329 = vunpack.c.l.b16 %v1265
      %v1330 = vunpack.c.l.b16 %v1266
      %v1331 = vunpack.c.l.b16 %v1267
      %v1332 = vunpack.c.l.b16 %v1268
      %v1333 = vunpack.c.l.b16 %v1269
      %v1334 = vunpack.c.l.b16 %v1270
      %v1335 = vunpack.c.l.b16 %v1271
      %v1336 = vpack.c.b16 %v1321, %v1320
      %v1337 = vpack.c.b16 %v1323, %v1322
      %v1338 = vpack.c.b16 %v1325, %v1324
      %v1339 = vpack.c.b16 %v1327, %v1326
      %v1340 = vpack.c.b16 %v1329, %v1328
      %v1341 = vpack.c.b16 %v1331, %v1330
      %v1342 = vpack.c.b16 %v1333, %v1332
      %v1343 = vpack.c.b16 %v1335, %v1334
      %1352 = vmatprep.subr.bf16.mxu0 0
      %1353 = vmatpush1.bf16.msra.mxu0 %v1336
      %1354 = vmatprep.subr.bf16.mxu0 0
      %1355 = vmatpush1.bf16.msra.mxu0 %v1337
      %1356 = vmatprep.subr.bf16.mxu0 0
      %1357 = vmatpush1.bf16.msra.mxu0 %v1338
      %1358 = vmatprep.subr.bf16.mxu0 0
      %1359 = vmatpush1.bf16.msra.mxu0 %v1339
      %1360 = vmatprep.subr.bf16.mxu0 0
      %1361 = vmatpush1.bf16.msra.mxu0 %v1340
      %1362 = vmatprep.subr.bf16.mxu0 0
      %1363 = vmatpush1.bf16.msra.mxu0 %v1341
      %1364 = vmatprep.subr.bf16.mxu0 0
      %1365 = vmatpush1.bf16.msra.mxu0 %v1342
      %1366 = vmatprep.subr.bf16.mxu0 0
      %1367 = vmatpush1.bf16.msra.mxu0 %v1343
      %1368 = vmatprep.subr.bf16.mxu0 0
      %1369 = vmatpush1.bf16.msra.mxu0 0
      %1370 = vmatprep.subr.bf16.mxu0 0
      %1371 = vmatpush1.bf16.msra.mxu0 0
      %1372 = vmatprep.subr.bf16.mxu0 0
      %1373 = vmatpush1.bf16.msra.mxu0 0
      %1374 = vmatprep.subr.bf16.mxu0 0
      %1375 = vmatpush1.bf16.msra.mxu0 0
      %1376 = vmatprep.subr.bf16.mxu0 0
      %1377 = vmatpush1.bf16.msra.mxu0 0
      %1378 = vmatprep.subr.bf16.mxu0 0
      %1379 = vmatpush1.bf16.msra.mxu0 0
      %1380 = vmatprep.subr.bf16.mxu0 0
      %1381 = vmatpush1.bf16.msra.mxu0 0
      %1382 = vmatprep.subr.bf16.mxu0 0
      %1383 = vmatpush1.bf16.msra.mxu0 0
      %1384 = vmatprep.mubr.bf16.mxu0 0
      %1385 = vmatmul.mubr.bf16.gmra.mrb[0].mxu0 %v1288
      %v1386 = vpop.f32.mrb[0].mxu0
      %v1387 = vadd.f32 0.0, %v1386
      %v1388 = vpop.f32.mrb[0].mxu0
      %v1389 = vpop.f32.mrb[0].mxu0
      %v1390 = vadd.f32 0.0, %v1389
      %v1391 = vpop.f32.mrb[0].mxu0
      %1392 = vmatprep.mubr.bf16.mxu0 0
      %1393 = vmatmul.mubr.bf16.gmra.mrb[0].mxu0 %v1289
      %v1394 = vpop.f32.mrb[0].mxu0
      %v1395 = vadd.f32 0.0, %v1394
      %v1396 = vpop.f32.mrb[0].mxu0
      %v1397 = vpop.f32.mrb[0].mxu0
      %v1398 = vadd.f32 0.0, %v1397
      %v1399 = vpop.f32.mrb[0].mxu0
      %1400 = vmatprep.mubr.bf16.mxu0 0
      %1401 = vmatmul.mubr.bf16.gmra.mrb[0].mxu0 %v1290
      %v1402 = vpop.f32.mrb[0].mxu0
      %v1403 = vadd.f32 0.0, %v1402
      %v1404 = vpop.f32.mrb[0].mxu0
      %v1405 = vpop.f32.mrb[0].mxu0
      %v1406 = vadd.f32 0.0, %v1405
      %v1407 = vpop.f32.mrb[0].mxu0
      %1408 = vmatprep.mubr.bf16.mxu0 0
      %1409 = vmatmul.mubr.bf16.gmra.mrb[0].mxu0 %v1291
      %v1410 = vpop.f32.mrb[0].mxu0
      %v1411 = vadd.f32 0.0, %v1410
      %v1412 = vpop.f32.mrb[0].mxu0
      %v1413 = vpop.f32.mrb[0].mxu0
      %v1414 = vadd.f32 0.0, %v1413
      %v1415 = vpop.f32.mrb[0].mxu0
      %1416 = vmatprep.mubr.bf16.mxu0 0
      %1417 = vmatmul.mubr.bf16.gmra.mrb[0].mxu0 %v1292
      %v1418 = vpop.f32.mrb[0].mxu0
      %v1419 = vadd.f32 0.0, %v1418
      %v1420 = vpop.f32.mrb[0].mxu0
      %v1421 = vpop.f32.mrb[0].mxu0
      %v1422 = vadd.f32 0.0, %v1421
      %v1423 = vpop.f32.mrb[0].mxu0
      %1424 = vmatprep.mubr.bf16.mxu0 0
      %1425 = vmatmul.mubr.bf16.gmra.mrb[0].mxu0 %v1293
      %v1426 = vpop.f32.mrb[0].mxu0
      %v1427 = vadd.f32 0.0, %v1426
      %v1428 = vpop.f32.mrb[0].mxu0
      %v1429 = vpop.f32.mrb[0].mxu0
      %v1430 = vadd.f32 0.0, %v1429
      %v1431 = vpop.f32.mrb[0].mxu0
      %1432 = vmatprep.mubr.bf16.mxu0 0
      %1433 = vmatmul.mubr.bf16.gmra.mrb[0].mxu0 %v1294
      %v1434 = vpop.f32.mrb[0].mxu0
      %v1435 = vadd.f32 0.0, %v1434
      %v1436 = vpop.f32.mrb[0].mxu0
      %v1437 = vpop.f32.mrb[0].mxu0
      %v1438 = vadd.f32 0.0, %v1437
      %v1439 = vpop.f32.mrb[0].mxu0
      %1440 = vmatprep.mubr.bf16.mxu0 0
      %1441 = vmatmul.mubr.bf16.gmra.mrb[0].mxu0 %v1295
      %v1442 = vpop.f32.mrb[0].mxu0
      %v1443 = vadd.f32 0.0, %v1442
      %v1444 = vpop.f32.mrb[0].mxu0
      %v1445 = vpop.f32.mrb[0].mxu0
      %v1446 = vadd.f32 0.0, %v1445
      %v1447 = vpop.f32.mrb[0].mxu0
      %1448 = vdwg.mxu0
      %v1449 = vadd.f32 %v1126, %v1387
      %v1450 = vadd.f32 %v1129, %v1390
      %v1451 = vadd.f32 %v1134, %v1395
      %v1452 = vadd.f32 %v1137, %v1398
      %v1453 = vadd.f32 %v1142, %v1403
      %v1454 = vadd.f32 %v1145, %v1406
      %v1455 = vadd.f32 %v1150, %v1411
      %v1456 = vadd.f32 %v1153, %v1414
      %v1457 = vadd.f32 %v1158, %v1419
      %v1458 = vadd.f32 %v1161, %v1422
      %v1459 = vadd.f32 %v1166, %v1427
      %v1460 = vadd.f32 %v1169, %v1430
      %v1461 = vadd.f32 %v1174, %v1435
      %v1462 = vadd.f32 %v1177, %v1438
      %v1463 = vadd.f32 %v1182, %v1443
      %v1464 = vadd.f32 %v1185, %v1446
      %s1465 = scalar_lea.vmem %s1, 192
      %v1466 = vld [vmem:[%s1465] sm:$0xf]
      %v1467 = vld [vmem:[%s1465 + $0x4] sm:$0xf]
      %v1468 = vld [vmem:[%s1465 + $0x8] sm:$0xf]
      %v1469 = vld [vmem:[%s1465 + $0xc] sm:$0xf]
      %v1470 = vld [vmem:[%s1465 + $0x10] sm:$0xf]
      %v1471 = vld [vmem:[%s1465 + $0x14] sm:$0xf]
      %v1472 = vld [vmem:[%s1465 + $0x18] sm:$0xf]
      %v1473 = vld [vmem:[%s1465 + $0x1c] sm:$0xf]
      %v1474 = vld [vmem:[%s1465 + $0x20] sm:$0xf]
      %v1475 = vld [vmem:[%s1465 + $0x24] sm:$0xf]
      %v1476 = vld [vmem:[%s1465 + $0x28] sm:$0xf]
      %v1477 = vld [vmem:[%s1465 + $0x2c] sm:$0xf]
      %v1478 = vld [vmem:[%s1465 + $0x30] sm:$0xf]
      %v1479 = vld [vmem:[%s1465 + $0x34] sm:$0xf]
      %v1480 = vld [vmem:[%s1465 + $0x38] sm:$0xf]
      %v1481 = vld [vmem:[%s1465 + $0x3c] sm:$0xf]
      %v1484 = vunpack.c.l.b16 %v584
      %v1485 = vunpack.c.l.b16 %v585
      %v1486 = vpack.c.b16 %v1485, %v1484
      %v1504 = vunpack.c.l.b16 %v1466
      %v1505 = vunpack.c.l.b16 %v1467
      %v1506 = vunpack.c.l.b16 %v1468
      %v1507 = vunpack.c.l.b16 %v1469
      %v1508 = vunpack.c.l.b16 %v1470
      %v1509 = vunpack.c.l.b16 %v1471
      %v1510 = vunpack.c.l.b16 %v1472
      %v1511 = vunpack.c.l.b16 %v1473
      %v1512 = vunpack.c.l.b16 %v1474
      %v1513 = vunpack.c.l.b16 %v1475
      %v1514 = vunpack.c.l.b16 %v1476
      %v1515 = vunpack.c.l.b16 %v1477
      %v1516 = vunpack.c.l.b16 %v1478
      %v1517 = vunpack.c.l.b16 %v1479
      %v1518 = vunpack.c.l.b16 %v1480
      %v1519 = vunpack.c.l.b16 %v1481
      %v1520 = vpack.c.b16 %v1505, %v1504
      %v1521 = vpack.c.b16 %v1507, %v1506
      %v1522 = vpack.c.b16 %v1509, %v1508
      %v1523 = vpack.c.b16 %v1511, %v1510
      %v1524 = vpack.c.b16 %v1513, %v1512
      %v1525 = vpack.c.b16 %v1515, %v1514
      %v1526 = vpack.c.b16 %v1517, %v1516
      %v1527 = vpack.c.b16 %v1519, %v1518
      %1536 = vmatprep.subr.bf16.mxu0 0
      %1537 = vmatpush1.bf16.msra.mxu0 %v1520
      %1538 = vmatprep.subr.bf16.mxu0 0
      %1539 = vmatpush1.bf16.msra.mxu0 %v1521
      %1540 = vmatprep.subr.bf16.mxu0 0
      %1541 = vmatpush1.bf16.msra.mxu0 %v1522
      %1542 = vmatprep.subr.bf16.mxu0 0
      %1543 = vmatpush1.bf16.msra.mxu0 %v1523
      %1544 = vmatprep.subr.bf16.mxu0 0
      %1545 = vmatpush1.bf16.msra.mxu0 %v1524
      %1546 = vmatprep.subr.bf16.mxu0 0
      %1547 = vmatpush1.bf16.msra.mxu0 %v1525
      %1548 = vmatprep.subr.bf16.mxu0 0
      %1549 = vmatpush1.bf16.msra.mxu0 %v1526
      %1550 = vmatprep.subr.bf16.mxu0 0
      %1551 = vmatpush1.bf16.msra.mxu0 %v1527
      %1552 = vmatprep.subr.bf16.mxu0 0
      %1553 = vmatpush1.bf16.msra.mxu0 0
      %1554 = vmatprep.subr.bf16.mxu0 0
      %1555 = vmatpush1.bf16.msra.mxu0 0
      %1556 = vmatprep.subr.bf16.mxu0 0
      %1557 = vmatpush1.bf16.msra.mxu0 0
      %1558 = vmatprep.subr.bf16.mxu0 0
      %1559 = vmatpush1.bf16.msra.mxu0 0
      %1560 = vmatprep.subr.bf16.mxu0 0
      %1561 = vmatpush1.bf16.msra.mxu0 0
      %1562 = vmatprep.subr.bf16.mxu0 0
      %1563 = vmatpush1.bf16.msra.mxu0 0
      %1564 = vmatprep.subr.bf16.mxu0 0
      %1565 = vmatpush1.bf16.msra.mxu0 0
      %1566 = vmatprep.subr.bf16.mxu0 0
      %1567 = vmatpush1.bf16.msra.mxu0 0
      %1568 = vmatprep.mubr.bf16.mxu0 0
      %1569 = vmatmul.mubr.bf16.gmra.mrb[0].mxu0 %v1028
      %v1570 = vpop.f32.mrb[0].mxu0
      %v1571 = vadd.f32 0.0, %v1570
      %v1572 = vpop.f32.mrb[0].mxu0
      %v1573 = vpop.f32.mrb[0].mxu0
      %v1574 = vadd.f32 0.0, %v1573
      %v1575 = vpop.f32.mrb[0].mxu0
      %1576 = vmatprep.mubr.bf16.mxu0 0
      %1577 = vmatmul.mubr.bf16.gmra.mrb[0].mxu0 %v1029
      %v1578 = vpop.f32.mrb[0].mxu0
      %v1579 = vadd.f32 0.0, %v1578
      %v1580 = vpop.f32.mrb[0].mxu0
      %v1581 = vpop.f32.mrb[0].mxu0
      %v1582 = vadd.f32 0.0, %v1581
      %v1583 = vpop.f32.mrb[0].mxu0
      %1584 = vmatprep.mubr.bf16.mxu0 0
      %1585 = vmatmul.mubr.bf16.gmra.mrb[0].mxu0 %v1030
      %v1586 = vpop.f32.mrb[0].mxu0
      %v1587 = vadd.f32 0.0, %v1586
      %v1588 = vpop.f32.mrb[0].mxu0
      %v1589 = vpop.f32.mrb[0].mxu0
      %v1590 = vadd.f32 0.0, %v1589
      %v1591 = vpop.f32.mrb[0].mxu0
      %1592 = vmatprep.mubr.bf16.mxu0 0
      %1593 = vmatmul.mubr.bf16.gmra.mrb[0].mxu0 %v1031
      %v1594 = vpop.f32.mrb[0].mxu0
      %v1595 = vadd.f32 0.0, %v1594
      %v1596 = vpop.f32.mrb[0].mxu0
      %v1597 = vpop.f32.mrb[0].mxu0
      %v1598 = vadd.f32 0.0, %v1597
      %v1599 = vpop.f32.mrb[0].mxu0
      %1600 = vmatprep.mubr.bf16.mxu0 0
      %1601 = vmatmul.mubr.bf16.gmra.mrb[0].mxu0 %v1032
      %v1602 = vpop.f32.mrb[0].mxu0
      %v1603 = vadd.f32 0.0, %v1602
      %v1604 = vpop.f32.mrb[0].mxu0
      %v1605 = vpop.f32.mrb[0].mxu0
      %v1606 = vadd.f32 0.0, %v1605
      %v1607 = vpop.f32.mrb[0].mxu0
      %1608 = vmatprep.mubr.bf16.mxu0 0
      %1609 = vmatmul.mubr.bf16.gmra.mrb[0].mxu0 %v1033
      %v1610 = vpop.f32.mrb[0].mxu0
      %v1611 = vadd.f32 0.0, %v1610
      %v1612 = vpop.f32.mrb[0].mxu0
      %v1613 = vpop.f32.mrb[0].mxu0
      %v1614 = vadd.f32 0.0, %v1613
      %v1615 = vpop.f32.mrb[0].mxu0
      %1616 = vmatprep.mubr.bf16.mxu0 0
      %1617 = vmatmul.mubr.bf16.gmra.mrb[0].mxu0 %v1034
      %v1618 = vpop.f32.mrb[0].mxu0
      %v1619 = vadd.f32 0.0, %v1618
      %v1620 = vpop.f32.mrb[0].mxu0
      %v1621 = vpop.f32.mrb[0].mxu0
      %v1622 = vadd.f32 0.0, %v1621
      %v1623 = vpop.f32.mrb[0].mxu0
      %1624 = vmatprep.mubr.bf16.mxu0 0
      %1625 = vmatmul.mubr.bf16.gmra.mrb[0].mxu0 %v1486
      %v1626 = vpop.f32.mrb[0].mxu0
      %v1627 = vadd.f32 0.0, %v1626
      %v1628 = vpop.f32.mrb[0].mxu0
      %v1629 = vpop.f32.mrb[0].mxu0
      %v1630 = vadd.f32 0.0, %v1629
      %v1631 = vpop.f32.mrb[0].mxu0
      %1632 = vdwg.mxu0
      %v1633 = vadd.f32 %v1449, %v1571
      %v1634 = vadd.f32 %v1450, %v1574
      %v1635 = vadd.f32 %v1451, %v1579
      %v1636 = vadd.f32 %v1452, %v1582
      %v1637 = vadd.f32 %v1453, %v1587
      %v1638 = vadd.f32 %v1454, %v1590
      %v1639 = vadd.f32 %v1455, %v1595
      %v1640 = vadd.f32 %v1456, %v1598
      %v1641 = vadd.f32 %v1457, %v1603
      %v1642 = vadd.f32 %v1458, %v1606
      %v1643 = vadd.f32 %v1459, %v1611
      %v1644 = vadd.f32 %v1460, %v1614
      %v1645 = vadd.f32 %v1461, %v1619
      %v1646 = vadd.f32 %v1462, %v1622
      %v1647 = vadd.f32 %v1463, %v1627
      %v1648 = vadd.f32 %v1464, %v1630
      %v1650 = vshrl.u32 %v584, 16
      %v1652 = vrot.slane %v1650, 4
      %v1653 = vshll.u32 %v584, 16
      %v1655 = vrot.slane %v1653, 5
      %v1656 = vor.u32 %v1652, %v1655
      %v1657 = vrot.slane %v1656, 4
      %v1659 = vshll.u32 %v585, 16
      %v1661 = vrot.slane %v1659, 5
      %v1662 = vsel %vm608, %v1657, %v1661
      %v1663 = vshrl.u32 %v585, 16
      %v1665 = vrot.slane %v1663, 4
      %v1666 = vor.u32 %v1665, %v1661
      %v1667 = vrot.slane %v1666, 4
      %v1669 = vshll.u32 %v586, 16
      %v1671 = vrot.slane %v1669, 5
      %v1672 = vsel %vm608, %v1667, %v1671
      %s1673 = scalar_lea.vmem %s1, 256
      %v1674 = vld [vmem:[%s1673] sm:$0xf]
      %v1675 = vld [vmem:[%s1673 + $0x4] sm:$0xf]
      %v1676 = vld [vmem:[%s1673 + $0x8] sm:$0xf]
      %v1677 = vld [vmem:[%s1673 + $0xc] sm:$0xf]
      %v1678 = vld [vmem:[%s1673 + $0x10] sm:$0xf]
      %v1679 = vld [vmem:[%s1673 + $0x14] sm:$0xf]
      %v1680 = vld [vmem:[%s1673 + $0x18] sm:$0xf]
      %v1681 = vld [vmem:[%s1673 + $0x1c] sm:$0xf]
      %v1682 = vld [vmem:[%s1673 + $0x20] sm:$0xf]
      %v1683 = vld [vmem:[%s1673 + $0x24] sm:$0xf]
      %v1684 = vld [vmem:[%s1673 + $0x28] sm:$0xf]
      %v1685 = vld [vmem:[%s1673 + $0x2c] sm:$0xf]
      %v1686 = vld [vmem:[%s1673 + $0x30] sm:$0xf]
      %v1687 = vld [vmem:[%s1673 + $0x34] sm:$0xf]
      %v1688 = vld [vmem:[%s1673 + $0x38] sm:$0xf]
      %v1689 = vld [vmem:[%s1673 + $0x3c] sm:$0xf]
      %v1690 = vunpack.c.l.b16 %v1662
      %v1691 = vunpack.c.l.b16 %v1672
      %v1692 = vpack.c.b16 %v1691, %v1690
      %v1710 = vunpack.c.l.b16 %v1674
      %v1711 = vunpack.c.l.b16 %v1675
      %v1712 = vunpack.c.l.b16 %v1676
      %v1713 = vunpack.c.l.b16 %v1677
      %v1714 = vunpack.c.l.b16 %v1678
      %v1715 = vunpack.c.l.b16 %v1679
      %v1716 = vunpack.c.l.b16 %v1680
      %v1717 = vunpack.c.l.b16 %v1681
      %v1718 = vunpack.c.l.b16 %v1682
      %v1719 = vunpack.c.l.b16 %v1683
      %v1720 = vunpack.c.l.b16 %v1684
      %v1721 = vunpack.c.l.b16 %v1685
      %v1722 = vunpack.c.l.b16 %v1686
      %v1723 = vunpack.c.l.b16 %v1687
      %v1724 = vunpack.c.l.b16 %v1688
      %v1725 = vunpack.c.l.b16 %v1689
      %v1726 = vpack.c.b16 %v1711, %v1710
      %v1727 = vpack.c.b16 %v1713, %v1712
      %v1728 = vpack.c.b16 %v1715, %v1714
      %v1729 = vpack.c.b16 %v1717, %v1716
      %v1730 = vpack.c.b16 %v1719, %v1718
      %v1731 = vpack.c.b16 %v1721, %v1720
      %v1732 = vpack.c.b16 %v1723, %v1722
      %v1733 = vpack.c.b16 %v1725, %v1724
      %1742 = vmatprep.subr.bf16.mxu0 0
      %1743 = vmatpush1.bf16.msra.mxu0 %v1726
      %1744 = vmatprep.subr.bf16.mxu0 0
      %1745 = vmatpush1.bf16.msra.mxu0 %v1727
      %1746 = vmatprep.subr.bf16.mxu0 0
      %1747 = vmatpush1.bf16.msra.mxu0 %v1728
      %1748 = vmatprep.subr.bf16.mxu0 0
      %1749 = vmatpush1.bf16.msra.mxu0 %v1729
      %1750 = vmatprep.subr.bf16.mxu0 0
      %1751 = vmatpush1.bf16.msra.mxu0 %v1730
      %1752 = vmatprep.subr.bf16.mxu0 0
      %1753 = vmatpush1.bf16.msra.mxu0 %v1731
      %1754 = vmatprep.subr.bf16.mxu0 0
      %1755 = vmatpush1.bf16.msra.mxu0 %v1732
      %1756 = vmatprep.subr.bf16.mxu0 0
      %1757 = vmatpush1.bf16.msra.mxu0 %v1733
      %1758 = vmatprep.subr.bf16.mxu0 0
      %1759 = vmatpush1.bf16.msra.mxu0 0
      %1760 = vmatprep.subr.bf16.mxu0 0
      %1761 = vmatpush1.bf16.msra.mxu0 0
      %1762 = vmatprep.subr.bf16.mxu0 0
      %1763 = vmatpush1.bf16.msra.mxu0 0
      %1764 = vmatprep.subr.bf16.mxu0 0
      %1765 = vmatpush1.bf16.msra.mxu0 0
      %1766 = vmatprep.subr.bf16.mxu0 0
      %1767 = vmatpush1.bf16.msra.mxu0 0
      %1768 = vmatprep.subr.bf16.mxu0 0
      %1769 = vmatpush1.bf16.msra.mxu0 0
      %1770 = vmatprep.subr.bf16.mxu0 0
      %1771 = vmatpush1.bf16.msra.mxu0 0
      %1772 = vmatprep.subr.bf16.mxu0 0
      %1773 = vmatpush1.bf16.msra.mxu0 0
      %1774 = vmatprep.mubr.bf16.mxu0 0
      %1775 = vmatmul.mubr.bf16.gmra.mrb[0].mxu0 %v835
      %v1776 = vpop.f32.mrb[0].mxu0
      %v1777 = vadd.f32 0.0, %v1776
      %v1778 = vpop.f32.mrb[0].mxu0
      %v1779 = vpop.f32.mrb[0].mxu0
      %v1780 = vadd.f32 0.0, %v1779
      %v1781 = vpop.f32.mrb[0].mxu0
      %1782 = vmatprep.mubr.bf16.mxu0 0
      %1783 = vmatmul.mubr.bf16.gmra.mrb[0].mxu0 %v836
      %v1784 = vpop.f32.mrb[0].mxu0
      %v1785 = vadd.f32 0.0, %v1784
      %v1786 = vpop.f32.mrb[0].mxu0
      %v1787 = vpop.f32.mrb[0].mxu0
      %v1788 = vadd.f32 0.0, %v1787
      %v1789 = vpop.f32.mrb[0].mxu0
      %1790 = vmatprep.mubr.bf16.mxu0 0
      %1791 = vmatmul.mubr.bf16.gmra.mrb[0].mxu0 %v837
      %v1792 = vpop.f32.mrb[0].mxu0
      %v1793 = vadd.f32 0.0, %v1792
      %v1794 = vpop.f32.mrb[0].mxu0
      %v1795 = vpop.f32.mrb[0].mxu0
      %v1796 = vadd.f32 0.0, %v1795
      %v1797 = vpop.f32.mrb[0].mxu0
      %1798 = vmatprep.mubr.bf16.mxu0 0
      %1799 = vmatmul.mubr.bf16.gmra.mrb[0].mxu0 %v838
      %v1800 = vpop.f32.mrb[0].mxu0
      %v1801 = vadd.f32 0.0, %v1800
      %v1802 = vpop.f32.mrb[0].mxu0
      %v1803 = vpop.f32.mrb[0].mxu0
      %v1804 = vadd.f32 0.0, %v1803
      %v1805 = vpop.f32.mrb[0].mxu0
      %1806 = vmatprep.mubr.bf16.mxu0 0
      %1807 = vmatmul.mubr.bf16.gmra.mrb[0].mxu0 %v839
      %v1808 = vpop.f32.mrb[0].mxu0
      %v1809 = vadd.f32 0.0, %v1808
      %v1810 = vpop.f32.mrb[0].mxu0
      %v1811 = vpop.f32.mrb[0].mxu0
      %v1812 = vadd.f32 0.0, %v1811
      %v1813 = vpop.f32.mrb[0].mxu0
      %1814 = vmatprep.mubr.bf16.mxu0 0
      %1815 = vmatmul.mubr.bf16.gmra.mrb[0].mxu0 %v840
      %v1816 = vpop.f32.mrb[0].mxu0
      %v1817 = vadd.f32 0.0, %v1816
      %v1818 = vpop.f32.mrb[0].mxu0
      %v1819 = vpop.f32.mrb[0].mxu0
      %v1820 = vadd.f32 0.0, %v1819
      %v1821 = vpop.f32.mrb[0].mxu0
      %1822 = vmatprep.mubr.bf16.mxu0 0
      %1823 = vmatmul.mubr.bf16.gmra.mrb[0].mxu0 %v841
      %v1824 = vpop.f32.mrb[0].mxu0
      %v1825 = vadd.f32 0.0, %v1824
      %v1826 = vpop.f32.mrb[0].mxu0
      %v1827 = vpop.f32.mrb[0].mxu0
      %v1828 = vadd.f32 0.0, %v1827
      %v1829 = vpop.f32.mrb[0].mxu0
      %1830 = vmatprep.mubr.bf16.mxu0 0
      %1831 = vmatmul.mubr.bf16.gmra.mrb[0].mxu0 %v1692
      %v1832 = vpop.f32.mrb[0].mxu0
      %v1833 = vadd.f32 0.0, %v1832
      %v1834 = vpop.f32.mrb[0].mxu0
      %v1835 = vpop.f32.mrb[0].mxu0
      %v1836 = vadd.f32 0.0, %v1835
      %v1837 = vpop.f32.mrb[0].mxu0
      %1838 = vdwg.mxu0
      %v1839 = vadd.f32 %v1633, %v1777
      %v1840 = vadd.f32 %v1634, %v1780
      %v1841 = vadd.f32 %v1635, %v1785
      %v1842 = vadd.f32 %v1636, %v1788
      %v1843 = vadd.f32 %v1637, %v1793
      %v1844 = vadd.f32 %v1638, %v1796
      %v1845 = vadd.f32 %v1639, %v1801
      %v1846 = vadd.f32 %v1640, %v1804
      %v1847 = vadd.f32 %v1641, %v1809
      %v1848 = vadd.f32 %v1642, %v1812
      %v1849 = vadd.f32 %v1643, %v1817
      %v1850 = vadd.f32 %v1644, %v1820
      %v1851 = vadd.f32 %v1645, %v1825
      %v1852 = vadd.f32 %v1646, %v1828
      %v1853 = vadd.f32 %v1647, %v1833
      %v1854 = vadd.f32 %v1648, %v1836
      %v1856 = vrot.slane %v584, 5
      %v1857 = vrot.slane %v1856, 4
      %v1858 = vrot.slane %v585, 5
      %v1859 = vsel %vm1198, %v1857, %v1858
      %v1860 = vrot.slane %v1858, 4
      %v1861 = vrot.slane %v586, 5
      %v1862 = vsel %vm1198, %v1860, %v1861
      %s1863 = scalar_lea.vmem %s1, 320
      %v1864 = vld [vmem:[%s1863] sm:$0xf]
      %v1865 = vld [vmem:[%s1863 + $0x4] sm:$0xf]
      %v1866 = vld [vmem:[%s1863 + $0x8] sm:$0xf]
      %v1867 = vld [vmem:[%s1863 + $0xc] sm:$0xf]
      %v1868 = vld [vmem:[%s1863 + $0x10] sm:$0xf]
      %v1869 = vld [vmem:[%s1863 + $0x14] sm:$0xf]
      %v1870 = vld [vmem:[%s1863 + $0x18] sm:$0xf]
      %v1871 = vld [vmem:[%s1863 + $0x1c] sm:$0xf]
      %v1872 = vld [vmem:[%s1863 + $0x20] sm:$0xf]
      %v1873 = vld [vmem:[%s1863 + $0x24] sm:$0xf]
      %v1874 = vld [vmem:[%s1863 + $0x28] sm:$0xf]
      %v1875 = vld [vmem:[%s1863 + $0x2c] sm:$0xf]
      %v1876 = vld [vmem:[%s1863 + $0x30] sm:$0xf]
      %v1877 = vld [vmem:[%s1863 + $0x34] sm:$0xf]
      %v1878 = vld [vmem:[%s1863 + $0x38] sm:$0xf]
      %v1879 = vld [vmem:[%s1863 + $0x3c] sm:$0xf]
      %v1880 = vunpack.c.l.b16 %v1859
      %v1881 = vunpack.c.l.b16 %v1862
      %v1882 = vpack.c.b16 %v1881, %v1880
      %v1900 = vunpack.c.l.b16 %v1864
      %v1901 = vunpack.c.l.b16 %v1865
      %v1902 = vunpack.c.l.b16 %v1866
      %v1903 = vunpack.c.l.b16 %v1867
      %v1904 = vunpack.c.l.b16 %v1868
      %v1905 = vunpack.c.l.b16 %v1869
      %v1906 = vunpack.c.l.b16 %v1870
      %v1907 = vunpack.c.l.b16 %v1871
      %v1908 = vunpack.c.l.b16 %v1872
      %v1909 = vunpack.c.l.b16 %v1873
      %v1910 = vunpack.c.l.b16 %v1874
      %v1911 = vunpack.c.l.b16 %v1875
      %v1912 = vunpack.c.l.b16 %v1876
      %v1913 = vunpack.c.l.b16 %v1877
      %v1914 = vunpack.c.l.b16 %v1878
      %v1915 = vunpack.c.l.b16 %v1879
      %v1916 = vpack.c.b16 %v1901, %v1900
      %v1917 = vpack.c.b16 %v1903, %v1902
      %v1918 = vpack.c.b16 %v1905, %v1904
      %v1919 = vpack.c.b16 %v1907, %v1906
      %v1920 = vpack.c.b16 %v1909, %v1908
      %v1921 = vpack.c.b16 %v1911, %v1910
      %v1922 = vpack.c.b16 %v1913, %v1912
      %v1923 = vpack.c.b16 %v1915, %v1914
      %1932 = vmatprep.subr.bf16.mxu0 0
      %1933 = vmatpush1.bf16.msra.mxu0 %v1916
      %1934 = vmatprep.subr.bf16.mxu0 0
      %1935 = vmatpush1.bf16.msra.mxu0 %v1917
      %1936 = vmatprep.subr.bf16.mxu0 0
      %1937 = vmatpush1.bf16.msra.mxu0 %v1918
      %1938 = vmatprep.subr.bf16.mxu0 0
      %1939 = vmatpush1.bf16.msra.mxu0 %v1919
      %1940 = vmatprep.subr.bf16.mxu0 0
      %1941 = vmatpush1.bf16.msra.mxu0 %v1920
      %1942 = vmatprep.subr.bf16.mxu0 0
      %1943 = vmatpush1.bf16.msra.mxu0 %v1921
      %1944 = vmatprep.subr.bf16.mxu0 0
      %1945 = vmatpush1.bf16.msra.mxu0 %v1922
      %1946 = vmatprep.subr.bf16.mxu0 0
      %1947 = vmatpush1.bf16.msra.mxu0 %v1923
      %1948 = vmatprep.subr.bf16.mxu0 0
      %1949 = vmatpush1.bf16.msra.mxu0 0
      %1950 = vmatprep.subr.bf16.mxu0 0
      %1951 = vmatpush1.bf16.msra.mxu0 0
      %1952 = vmatprep.subr.bf16.mxu0 0
      %1953 = vmatpush1.bf16.msra.mxu0 0
      %1954 = vmatprep.subr.bf16.mxu0 0
      %1955 = vmatpush1.bf16.msra.mxu0 0
      %1956 = vmatprep.subr.bf16.mxu0 0
      %1957 = vmatpush1.bf16.msra.mxu0 0
      %1958 = vmatprep.subr.bf16.mxu0 0
      %1959 = vmatpush1.bf16.msra.mxu0 0
      %1960 = vmatprep.subr.bf16.mxu0 0
      %1961 = vmatpush1.bf16.msra.mxu0 0
      %1962 = vmatprep.subr.bf16.mxu0 0
      %1963 = vmatpush1.bf16.msra.mxu0 0
      %1964 = vmatprep.mubr.bf16.mxu0 0
      %1965 = vmatmul.mubr.bf16.gmra.mrb[0].mxu0 %v1289
      %v1966 = vpop.f32.mrb[0].mxu0
      %v1967 = vadd.f32 0.0, %v1966
      %v1968 = vpop.f32.mrb[0].mxu0
      %v1969 = vpop.f32.mrb[0].mxu0
      %v1970 = vadd.f32 0.0, %v1969
      %v1971 = vpop.f32.mrb[0].mxu0
      %1972 = vmatprep.mubr.bf16.mxu0 0
      %1973 = vmatmul.mubr.bf16.gmra.mrb[0].mxu0 %v1290
      %v1974 = vpop.f32.mrb[0].mxu0
      %v1975 = vadd.f32 0.0, %v1974
      %v1976 = vpop.f32.mrb[0].mxu0
      %v1977 = vpop.f32.mrb[0].mxu0
      %v1978 = vadd.f32 0.0, %v1977
      %v1979 = vpop.f32.mrb[0].mxu0
      %1980 = vmatprep.mubr.bf16.mxu0 0
      %1981 = vmatmul.mubr.bf16.gmra.mrb[0].mxu0 %v1291
      %v1982 = vpop.f32.mrb[0].mxu0
      %v1983 = vadd.f32 0.0, %v1982
      %v1984 = vpop.f32.mrb[0].mxu0
      %v1985 = vpop.f32.mrb[0].mxu0
      %v1986 = vadd.f32 0.0, %v1985
      %v1987 = vpop.f32.mrb[0].mxu0
      %1988 = vmatprep.mubr.bf16.mxu0 0
      %1989 = vmatmul.mubr.bf16.gmra.mrb[0].mxu0 %v1292
      %v1990 = vpop.f32.mrb[0].mxu0
      %v1991 = vadd.f32 0.0, %v1990
      %v1992 = vpop.f32.mrb[0].mxu0
      %v1993 = vpop.f32.mrb[0].mxu0
      %v1994 = vadd.f32 0.0, %v1993
      %v1995 = vpop.f32.mrb[0].mxu0
      %1996 = vmatprep.mubr.bf16.mxu0 0
      %1997 = vmatmul.mubr.bf16.gmra.mrb[0].mxu0 %v1293
      %v1998 = vpop.f32.mrb[0].mxu0
      %v1999 = vadd.f32 0.0, %v1998
      %v2000 = vpop.f32.mrb[0].mxu0
      %v2001 = vpop.f32.mrb[0].mxu0
      %v2002 = vadd.f32 0.0, %v2001
      %v2003 = vpop.f32.mrb[0].mxu0
      %2004 = vmatprep.mubr.bf16.mxu0 0
      %2005 = vmatmul.mubr.bf16.gmra.mrb[0].mxu0 %v1294
      %v2006 = vpop.f32.mrb[0].mxu0
      %v2007 = vadd.f32 0.0, %v2006
      %v2008 = vpop.f32.mrb[0].mxu0
      %v2009 = vpop.f32.mrb[0].mxu0
      %v2010 = vadd.f32 0.0, %v2009
      %v2011 = vpop.f32.mrb[0].mxu0
      %2012 = vmatprep.mubr.bf16.mxu0 0
      %2013 = vmatmul.mubr.bf16.gmra.mrb[0].mxu0 %v1295
      %v2014 = vpop.f32.mrb[0].mxu0
      %v2015 = vadd.f32 0.0, %v2014
      %v2016 = vpop.f32.mrb[0].mxu0
      %v2017 = vpop.f32.mrb[0].mxu0
      %v2018 = vadd.f32 0.0, %v2017
      %v2019 = vpop.f32.mrb[0].mxu0
      %2020 = vmatprep.mubr.bf16.mxu0 0
      %2021 = vmatmul.mubr.bf16.gmra.mrb[0].mxu0 %v1882
      %v2022 = vpop.f32.mrb[0].mxu0
      %v2023 = vadd.f32 0.0, %v2022
      %v2024 = vpop.f32.mrb[0].mxu0
      %v2025 = vpop.f32.mrb[0].mxu0
      %v2026 = vadd.f32 0.0, %v2025
      %v2027 = vpop.f32.mrb[0].mxu0
      %2028 = vdwg.mxu0
      %v2029 = vadd.f32 %v1839, %v1967
      %v2030 = vadd.f32 %v1840, %v1970
      %v2031 = vadd.f32 %v1841, %v1975
      %v2032 = vadd.f32 %v1842, %v1978
      %v2033 = vadd.f32 %v1843, %v1983
      %v2034 = vadd.f32 %v1844, %v1986
      %v2035 = vadd.f32 %v1845, %v1991
      %v2036 = vadd.f32 %v1846, %v1994
      %v2037 = vadd.f32 %v1847, %v1999
      %v2038 = vadd.f32 %v1848, %v2002
      %v2039 = vadd.f32 %v1849, %v2007
      %v2040 = vadd.f32 %v1850, %v2010
      %v2041 = vadd.f32 %v1851, %v2015
      %v2042 = vadd.f32 %v1852, %v2018
      %v2043 = vadd.f32 %v1853, %v2023
      %v2044 = vadd.f32 %v1854, %v2026
      %s2045 = scalar_lea.vmem %s1, 384
      %v2046 = vld [vmem:[%s2045] sm:$0xf]
      %v2047 = vld [vmem:[%s2045 + $0x4] sm:$0xf]
      %v2048 = vld [vmem:[%s2045 + $0x8] sm:$0xf]
      %v2049 = vld [vmem:[%s2045 + $0xc] sm:$0xf]
      %v2050 = vld [vmem:[%s2045 + $0x10] sm:$0xf]
      %v2051 = vld [vmem:[%s2045 + $0x14] sm:$0xf]
      %v2052 = vld [vmem:[%s2045 + $0x18] sm:$0xf]
      %v2053 = vld [vmem:[%s2045 + $0x1c] sm:$0xf]
      %v2054 = vld [vmem:[%s2045 + $0x20] sm:$0xf]
      %v2055 = vld [vmem:[%s2045 + $0x24] sm:$0xf]
      %v2056 = vld [vmem:[%s2045 + $0x28] sm:$0xf]
      %v2057 = vld [vmem:[%s2045 + $0x2c] sm:$0xf]
      %v2058 = vld [vmem:[%s2045 + $0x30] sm:$0xf]
      %v2059 = vld [vmem:[%s2045 + $0x34] sm:$0xf]
      %v2060 = vld [vmem:[%s2045 + $0x38] sm:$0xf]
      %v2061 = vld [vmem:[%s2045 + $0x3c] sm:$0xf]
      %v2064 = vunpack.c.l.b16 %v587
      %v2065 = vunpack.c.l.b16 %v588
      %v2066 = vpack.c.b16 %v2065, %v2064
      %v2084 = vunpack.c.l.b16 %v2046
      %v2085 = vunpack.c.l.b16 %v2047
      %v2086 = vunpack.c.l.b16 %v2048
      %v2087 = vunpack.c.l.b16 %v2049
      %v2088 = vunpack.c.l.b16 %v2050
      %v2089 = vunpack.c.l.b16 %v2051
      %v2090 = vunpack.c.l.b16 %v2052
      %v2091 = vunpack.c.l.b16 %v2053
      %v2092 = vunpack.c.l.b16 %v2054
      %v2093 = vunpack.c.l.b16 %v2055
      %v2094 = vunpack.c.l.b16 %v2056
      %v2095 = vunpack.c.l.b16 %v2057
      %v2096 = vunpack.c.l.b16 %v2058
      %v2097 = vunpack.c.l.b16 %v2059
      %v2098 = vunpack.c.l.b16 %v2060
      %v2099 = vunpack.c.l.b16 %v2061
      %v2100 = vpack.c.b16 %v2085, %v2084
      %v2101 = vpack.c.b16 %v2087, %v2086
      %v2102 = vpack.c.b16 %v2089, %v2088
      %v2103 = vpack.c.b16 %v2091, %v2090
      %v2104 = vpack.c.b16 %v2093, %v2092
      %v2105 = vpack.c.b16 %v2095, %v2094
      %v2106 = vpack.c.b16 %v2097, %v2096
      %v2107 = vpack.c.b16 %v2099, %v2098
      %2116 = vmatprep.subr.bf16.mxu0 0
      %2117 = vmatpush1.bf16.msra.mxu0 %v2100
      %2118 = vmatprep.subr.bf16.mxu0 0
      %2119 = vmatpush1.bf16.msra.mxu0 %v2101
      %2120 = vmatprep.subr.bf16.mxu0 0
      %2121 = vmatpush1.bf16.msra.mxu0 %v2102
      %2122 = vmatprep.subr.bf16.mxu0 0
      %2123 = vmatpush1.bf16.msra.mxu0 %v2103
      %2124 = vmatprep.subr.bf16.mxu0 0
      %2125 = vmatpush1.bf16.msra.mxu0 %v2104
      %2126 = vmatprep.subr.bf16.mxu0 0
      %2127 = vmatpush1.bf16.msra.mxu0 %v2105
      %2128 = vmatprep.subr.bf16.mxu0 0
      %2129 = vmatpush1.bf16.msra.mxu0 %v2106
      %2130 = vmatprep.subr.bf16.mxu0 0
      %2131 = vmatpush1.bf16.msra.mxu0 %v2107
      %2132 = vmatprep.subr.bf16.mxu0 0
      %2133 = vmatpush1.bf16.msra.mxu0 0
      %2134 = vmatprep.subr.bf16.mxu0 0
      %2135 = vmatpush1.bf16.msra.mxu0 0
      %2136 = vmatprep.subr.bf16.mxu0 0
      %2137 = vmatpush1.bf16.msra.mxu0 0
      %2138 = vmatprep.subr.bf16.mxu0 0
      %2139 = vmatpush1.bf16.msra.mxu0 0
      %2140 = vmatprep.subr.bf16.mxu0 0
      %2141 = vmatpush1.bf16.msra.mxu0 0
      %2142 = vmatprep.subr.bf16.mxu0 0
      %2143 = vmatpush1.bf16.msra.mxu0 0
      %2144 = vmatprep.subr.bf16.mxu0 0
      %2145 = vmatpush1.bf16.msra.mxu0 0
      %2146 = vmatprep.subr.bf16.mxu0 0
      %2147 = vmatpush1.bf16.msra.mxu0 0
      %2148 = vmatprep.mubr.bf16.mxu0 0
      %2149 = vmatmul.mubr.bf16.gmra.mrb[0].mxu0 %v1029
      %v2150 = vpop.f32.mrb[0].mxu0
      %v2151 = vadd.f32 0.0, %v2150
      %v2152 = vpop.f32.mrb[0].mxu0
      %v2153 = vpop.f32.mrb[0].mxu0
      %v2154 = vadd.f32 0.0, %v2153
      %v2155 = vpop.f32.mrb[0].mxu0
      %2156 = vmatprep.mubr.bf16.mxu0 0
      %2157 = vmatmul.mubr.bf16.gmra.mrb[0].mxu0 %v1030
      %v2158 = vpop.f32.mrb[0].mxu0
      %v2159 = vadd.f32 0.0, %v2158
      %v2160 = vpop.f32.mrb[0].mxu0
      %v2161 = vpop.f32.mrb[0].mxu0
      %v2162 = vadd.f32 0.0, %v2161
      %v2163 = vpop.f32.mrb[0].mxu0
      %2164 = vmatprep.mubr.bf16.mxu0 0
      %2165 = vmatmul.mubr.bf16.gmra.mrb[0].mxu0 %v1031
      %v2166 = vpop.f32.mrb[0].mxu0
      %v2167 = vadd.f32 0.0, %v2166
      %v2168 = vpop.f32.mrb[0].mxu0
      %v2169 = vpop.f32.mrb[0].mxu0
      %v2170 = vadd.f32 0.0, %v2169
      %v2171 = vpop.f32.mrb[0].mxu0
      %2172 = vmatprep.mubr.bf16.mxu0 0
      %2173 = vmatmul.mubr.bf16.gmra.mrb[0].mxu0 %v1032
      %v2174 = vpop.f32.mrb[0].mxu0
      %v2175 = vadd.f32 0.0, %v2174
      %v2176 = vpop.f32.mrb[0].mxu0
      %v2177 = vpop.f32.mrb[0].mxu0
      %v2178 = vadd.f32 0.0, %v2177
      %v2179 = vpop.f32.mrb[0].mxu0
      %2180 = vmatprep.mubr.bf16.mxu0 0
      %2181 = vmatmul.mubr.bf16.gmra.mrb[0].mxu0 %v1033
      %v2182 = vpop.f32.mrb[0].mxu0
      %v2183 = vadd.f32 0.0, %v2182
      %v2184 = vpop.f32.mrb[0].mxu0
      %v2185 = vpop.f32.mrb[0].mxu0
      %v2186 = vadd.f32 0.0, %v2185
      %v2187 = vpop.f32.mrb[0].mxu0
      %2188 = vmatprep.mubr.bf16.mxu0 0
      %2189 = vmatmul.mubr.bf16.gmra.mrb[0].mxu0 %v1034
      %v2190 = vpop.f32.mrb[0].mxu0
      %v2191 = vadd.f32 0.0, %v2190
      %v2192 = vpop.f32.mrb[0].mxu0
      %v2193 = vpop.f32.mrb[0].mxu0
      %v2194 = vadd.f32 0.0, %v2193
      %v2195 = vpop.f32.mrb[0].mxu0
      %2196 = vmatprep.mubr.bf16.mxu0 0
      %2197 = vmatmul.mubr.bf16.gmra.mrb[0].mxu0 %v1486
      %v2198 = vpop.f32.mrb[0].mxu0
      %v2199 = vadd.f32 0.0, %v2198
      %v2200 = vpop.f32.mrb[0].mxu0
      %v2201 = vpop.f32.mrb[0].mxu0
      %v2202 = vadd.f32 0.0, %v2201
      %v2203 = vpop.f32.mrb[0].mxu0
      %2204 = vmatprep.mubr.bf16.mxu0 0
      %2205 = vmatmul.mubr.bf16.gmra.mrb[0].mxu0 %v2066
      %v2206 = vpop.f32.mrb[0].mxu0
      %v2207 = vadd.f32 0.0, %v2206
      %v2208 = vpop.f32.mrb[0].mxu0
      %v2209 = vpop.f32.mrb[0].mxu0
      %v2210 = vadd.f32 0.0, %v2209
      %v2211 = vpop.f32.mrb[0].mxu0
      %2212 = vdwg.mxu0
      %v2213 = vadd.f32 %v2029, %v2151
      %v2214 = vadd.f32 %v2030, %v2154
      %v2215 = vadd.f32 %v2031, %v2159
      %v2216 = vadd.f32 %v2032, %v2162
      %v2217 = vadd.f32 %v2033, %v2167
      %v2218 = vadd.f32 %v2034, %v2170
      %v2219 = vadd.f32 %v2035, %v2175
      %v2220 = vadd.f32 %v2036, %v2178
      %v2221 = vadd.f32 %v2037, %v2183
      %v2222 = vadd.f32 %v2038, %v2186
      %v2223 = vadd.f32 %v2039, %v2191
      %v2224 = vadd.f32 %v2040, %v2194
      %v2225 = vadd.f32 %v2041, %v2199
      %v2226 = vadd.f32 %v2042, %v2202
      %v2227 = vadd.f32 %v2043, %v2207
      %v2228 = vadd.f32 %v2044, %v2210
      %v2230 = vshrl.u32 %v587, 16
      %v2232 = vrot.slane %v2230, 4
      %v2233 = vshll.u32 %v587, 16
      %v2235 = vrot.slane %v2233, 5
      %v2236 = vor.u32 %v2232, %v2235
      %v2237 = vrot.slane %v2236, 4
      %v2239 = vshll.u32 %v588, 16
      %v2241 = vrot.slane %v2239, 5
      %v2242 = vsel %vm608, %v2237, %v2241
      %v2243 = vshrl.u32 %v588, 16
      %v2245 = vrot.slane %v2243, 4
      %v2246 = vor.u32 %v2245, %v2241
      %v2247 = vrot.slane %v2246, 4
      %v2249 = vshll.u32 %v589, 16
      %v2251 = vrot.slane %v2249, 5
      %v2252 = vsel %vm608, %v2247, %v2251
      %s2253 = scalar_lea.vmem %s1, 448
      %v2254 = vld [vmem:[%s2253] sm:$0xf]
      %v2255 = vld [vmem:[%s2253 + $0x4] sm:$0xf]
      %v2256 = vld [vmem:[%s2253 + $0x8] sm:$0xf]
      %v2257 = vld [vmem:[%s2253 + $0xc] sm:$0xf]
      %v2258 = vld [vmem:[%s2253 + $0x10] sm:$0xf]
      %v2259 = vld [vmem:[%s2253 + $0x14] sm:$0xf]
      %v2260 = vld [vmem:[%s2253 + $0x18] sm:$0xf]
      %v2261 = vld [vmem:[%s2253 + $0x1c] sm:$0xf]
      %v2262 = vld [vmem:[%s2253 + $0x20] sm:$0xf]
      %v2263 = vld [vmem:[%s2253 + $0x24] sm:$0xf]
      %v2264 = vld [vmem:[%s2253 + $0x28] sm:$0xf]
      %v2265 = vld [vmem:[%s2253 + $0x2c] sm:$0xf]
      %v2266 = vld [vmem:[%s2253 + $0x30] sm:$0xf]
      %v2267 = vld [vmem:[%s2253 + $0x34] sm:$0xf]
      %v2268 = vld [vmem:[%s2253 + $0x38] sm:$0xf]
      %v2269 = vld [vmem:[%s2253 + $0x3c] sm:$0xf]
      %v2270 = vunpack.c.l.b16 %v2242
      %v2271 = vunpack.c.l.b16 %v2252
      %v2272 = vpack.c.b16 %v2271, %v2270
      %v2290 = vunpack.c.l.b16 %v2254
      %v2291 = vunpack.c.l.b16 %v2255
      %v2292 = vunpack.c.l.b16 %v2256
      %v2293 = vunpack.c.l.b16 %v2257
      %v2294 = vunpack.c.l.b16 %v2258
      %v2295 = vunpack.c.l.b16 %v2259
      %v2296 = vunpack.c.l.b16 %v2260
      %v2297 = vunpack.c.l.b16 %v2261
      %v2298 = vunpack.c.l.b16 %v2262
      %v2299 = vunpack.c.l.b16 %v2263
      %v2300 = vunpack.c.l.b16 %v2264
      %v2301 = vunpack.c.l.b16 %v2265
      %v2302 = vunpack.c.l.b16 %v2266
      %v2303 = vunpack.c.l.b16 %v2267
      %v2304 = vunpack.c.l.b16 %v2268
      %v2305 = vunpack.c.l.b16 %v2269
      %v2306 = vpack.c.b16 %v2291, %v2290
      %v2307 = vpack.c.b16 %v2293, %v2292
      %v2308 = vpack.c.b16 %v2295, %v2294
      %v2309 = vpack.c.b16 %v2297, %v2296
      %v2310 = vpack.c.b16 %v2299, %v2298
      %v2311 = vpack.c.b16 %v2301, %v2300
      %v2312 = vpack.c.b16 %v2303, %v2302
      %v2313 = vpack.c.b16 %v2305, %v2304
      %2322 = vmatprep.subr.bf16.mxu0 0
      %2323 = vmatpush1.bf16.msra.mxu0 %v2306
      %2324 = vmatprep.subr.bf16.mxu0 0
      %2325 = vmatpush1.bf16.msra.mxu0 %v2307
      %2326 = vmatprep.subr.bf16.mxu0 0
      %2327 = vmatpush1.bf16.msra.mxu0 %v2308
      %2328 = vmatprep.subr.bf16.mxu0 0
      %2329 = vmatpush1.bf16.msra.mxu0 %v2309
      %2330 = vmatprep.subr.bf16.mxu0 0
      %2331 = vmatpush1.bf16.msra.mxu0 %v2310
      %2332 = vmatprep.subr.bf16.mxu0 0
      %2333 = vmatpush1.bf16.msra.mxu0 %v2311
      %2334 = vmatprep.subr.bf16.mxu0 0
      %2335 = vmatpush1.bf16.msra.mxu0 %v2312
      %2336 = vmatprep.subr.bf16.mxu0 0
      %2337 = vmatpush1.bf16.msra.mxu0 %v2313
      %2338 = vmatprep.subr.bf16.mxu0 0
      %2339 = vmatpush1.bf16.msra.mxu0 0
      %2340 = vmatprep.subr.bf16.mxu0 0
      %2341 = vmatpush1.bf16.msra.mxu0 0
      %2342 = vmatprep.subr.bf16.mxu0 0
      %2343 = vmatpush1.bf16.msra.mxu0 0
      %2344 = vmatprep.subr.bf16.mxu0 0
      %2345 = vmatpush1.bf16.msra.mxu0 0
      %2346 = vmatprep.subr.bf16.mxu0 0
      %2347 = vmatpush1.bf16.msra.mxu0 0
      %2348 = vmatprep.subr.bf16.mxu0 0
      %2349 = vmatpush1.bf16.msra.mxu0 0
      %2350 = vmatprep.subr.bf16.mxu0 0
      %2351 = vmatpush1.bf16.msra.mxu0 0
      %2352 = vmatprep.subr.bf16.mxu0 0
      %2353 = vmatpush1.bf16.msra.mxu0 0
      %2354 = vmatprep.mubr.bf16.mxu0 0
      %2355 = vmatmul.mubr.bf16.gmra.mrb[0].mxu0 %v836
      %v2356 = vpop.f32.mrb[0].mxu0
      %v2357 = vadd.f32 0.0, %v2356
      %v2358 = vpop.f32.mrb[0].mxu0
      %v2359 = vpop.f32.mrb[0].mxu0
      %v2360 = vadd.f32 0.0, %v2359
      %v2361 = vpop.f32.mrb[0].mxu0
      %2362 = vmatprep.mubr.bf16.mxu0 0
      %2363 = vmatmul.mubr.bf16.gmra.mrb[0].mxu0 %v837
      %v2364 = vpop.f32.mrb[0].mxu0
      %v2365 = vadd.f32 0.0, %v2364
      %v2366 = vpop.f32.mrb[0].mxu0
      %v2367 = vpop.f32.mrb[0].mxu0
      %v2368 = vadd.f32 0.0, %v2367
      %v2369 = vpop.f32.mrb[0].mxu0
      %2370 = vmatprep.mubr.bf16.mxu0 0
      %2371 = vmatmul.mubr.bf16.gmra.mrb[0].mxu0 %v838
      %v2372 = vpop.f32.mrb[0].mxu0
      %v2373 = vadd.f32 0.0, %v2372
      %v2374 = vpop.f32.mrb[0].mxu0
      %v2375 = vpop.f32.mrb[0].mxu0
      %v2376 = vadd.f32 0.0, %v2375
      %v2377 = vpop.f32.mrb[0].mxu0
      %2378 = vmatprep.mubr.bf16.mxu0 0
      %2379 = vmatmul.mubr.bf16.gmra.mrb[0].mxu0 %v839
      %v2380 = vpop.f32.mrb[0].mxu0
      %v2381 = vadd.f32 0.0, %v2380
      %v2382 = vpop.f32.mrb[0].mxu0
      %v2383 = vpop.f32.mrb[0].mxu0
      %v2384 = vadd.f32 0.0, %v2383
      %v2385 = vpop.f32.mrb[0].mxu0
      %2386 = vmatprep.mubr.bf16.mxu0 0
      %2387 = vmatmul.mubr.bf16.gmra.mrb[0].mxu0 %v840
      %v2388 = vpop.f32.mrb[0].mxu0
      %v2389 = vadd.f32 0.0, %v2388
      %v2390 = vpop.f32.mrb[0].mxu0
      %v2391 = vpop.f32.mrb[0].mxu0
      %v2392 = vadd.f32 0.0, %v2391
      %v2393 = vpop.f32.mrb[0].mxu0
      %2394 = vmatprep.mubr.bf16.mxu0 0
      %2395 = vmatmul.mubr.bf16.gmra.mrb[0].mxu0 %v841
      %v2396 = vpop.f32.mrb[0].mxu0
      %v2397 = vadd.f32 0.0, %v2396
      %v2398 = vpop.f32.mrb[0].mxu0
      %v2399 = vpop.f32.mrb[0].mxu0
      %v2400 = vadd.f32 0.0, %v2399
      %v2401 = vpop.f32.mrb[0].mxu0
      %2402 = vmatprep.mubr.bf16.mxu0 0
      %2403 = vmatmul.mubr.bf16.gmra.mrb[0].mxu0 %v1692
      %v2404 = vpop.f32.mrb[0].mxu0
      %v2405 = vadd.f32 0.0, %v2404
      %v2406 = vpop.f32.mrb[0].mxu0
      %v2407 = vpop.f32.mrb[0].mxu0
      %v2408 = vadd.f32 0.0, %v2407
      %v2409 = vpop.f32.mrb[0].mxu0
      %2410 = vmatprep.mubr.bf16.mxu0 0
      %2411 = vmatmul.mubr.bf16.gmra.mrb[0].mxu0 %v2272
      %v2412 = vpop.f32.mrb[0].mxu0
      %v2413 = vadd.f32 0.0, %v2412
      %v2414 = vpop.f32.mrb[0].mxu0
      %v2415 = vpop.f32.mrb[0].mxu0
      %v2416 = vadd.f32 0.0, %v2415
      %v2417 = vpop.f32.mrb[0].mxu0
      %2418 = vdwg.mxu0
      %v2419 = vadd.f32 %v2213, %v2357
      %v2420 = vadd.f32 %v2214, %v2360
      %v2421 = vadd.f32 %v2215, %v2365
      %v2422 = vadd.f32 %v2216, %v2368
      %v2423 = vadd.f32 %v2217, %v2373
      %v2424 = vadd.f32 %v2218, %v2376
      %v2425 = vadd.f32 %v2219, %v2381
      %v2426 = vadd.f32 %v2220, %v2384
      %v2427 = vadd.f32 %v2221, %v2389
      %v2428 = vadd.f32 %v2222, %v2392
      %v2429 = vadd.f32 %v2223, %v2397
      %v2430 = vadd.f32 %v2224, %v2400
      %v2431 = vadd.f32 %v2225, %v2405
      %v2432 = vadd.f32 %v2226, %v2408
      %v2433 = vadd.f32 %v2227, %v2413
      %v2434 = vadd.f32 %v2228, %v2416
      %v2436 = vrot.slane %v587, 5
      %v2437 = vrot.slane %v2436, 4
      %v2438 = vrot.slane %v588, 5
      %v2439 = vsel %vm1198, %v2437, %v2438
      %v2440 = vrot.slane %v2438, 4
      %v2441 = vrot.slane %v589, 5
      %v2442 = vsel %vm1198, %v2440, %v2441
      %s2443 = scalar_lea.vmem %s1, 512
      %v2444 = vld [vmem:[%s2443] sm:$0xf]
      %v2445 = vld [vmem:[%s2443 + $0x4] sm:$0xf]
      %v2446 = vld [vmem:[%s2443 + $0x8] sm:$0xf]
      %v2447 = vld [vmem:[%s2443 + $0xc] sm:$0xf]
      %v2448 = vld [vmem:[%s2443 + $0x10] sm:$0xf]
      %v2449 = vld [vmem:[%s2443 + $0x14] sm:$0xf]
      %v2450 = vld [vmem:[%s2443 + $0x18] sm:$0xf]
      %v2451 = vld [vmem:[%s2443 + $0x1c] sm:$0xf]
      %v2452 = vld [vmem:[%s2443 + $0x20] sm:$0xf]
      %v2453 = vld [vmem:[%s2443 + $0x24] sm:$0xf]
      %v2454 = vld [vmem:[%s2443 + $0x28] sm:$0xf]
      %v2455 = vld [vmem:[%s2443 + $0x2c] sm:$0xf]
      %v2456 = vld [vmem:[%s2443 + $0x30] sm:$0xf]
      %v2457 = vld [vmem:[%s2443 + $0x34] sm:$0xf]
      %v2458 = vld [vmem:[%s2443 + $0x38] sm:$0xf]
      %v2459 = vld [vmem:[%s2443 + $0x3c] sm:$0xf]
      %v2460 = vunpack.c.l.b16 %v2439
      %v2461 = vunpack.c.l.b16 %v2442
      %v2462 = vpack.c.b16 %v2461, %v2460
      %v2480 = vunpack.c.l.b16 %v2444
      %v2481 = vunpack.c.l.b16 %v2445
      %v2482 = vunpack.c.l.b16 %v2446
      %v2483 = vunpack.c.l.b16 %v2447
      %v2484 = vunpack.c.l.b16 %v2448
      %v2485 = vunpack.c.l.b16 %v2449
      %v2486 = vunpack.c.l.b16 %v2450
      %v2487 = vunpack.c.l.b16 %v2451
      %v2488 = vunpack.c.l.b16 %v2452
      %v2489 = vunpack.c.l.b16 %v2453
      %v2490 = vunpack.c.l.b16 %v2454
      %v2491 = vunpack.c.l.b16 %v2455
      %v2492 = vunpack.c.l.b16 %v2456
      %v2493 = vunpack.c.l.b16 %v2457
      %v2494 = vunpack.c.l.b16 %v2458
      %v2495 = vunpack.c.l.b16 %v2459
      %v2496 = vpack.c.b16 %v2481, %v2480
      %v2497 = vpack.c.b16 %v2483, %v2482
      %v2498 = vpack.c.b16 %v2485, %v2484
      %v2499 = vpack.c.b16 %v2487, %v2486
      %v2500 = vpack.c.b16 %v2489, %v2488
      %v2501 = vpack.c.b16 %v2491, %v2490
      %v2502 = vpack.c.b16 %v2493, %v2492
      %v2503 = vpack.c.b16 %v2495, %v2494
      %2512 = vmatprep.subr.bf16.mxu0 0
      %2513 = vmatpush1.bf16.msra.mxu0 %v2496
      %2514 = vmatprep.subr.bf16.mxu0 0
      %2515 = vmatpush1.bf16.msra.mxu0 %v2497
      %2516 = vmatprep.subr.bf16.mxu0 0
      %2517 = vmatpush1.bf16.msra.mxu0 %v2498
      %2518 = vmatprep.subr.bf16.mxu0 0
      %2519 = vmatpush1.bf16.msra.mxu0 %v2499
      %2520 = vmatprep.subr.bf16.mxu0 0
      %2521 = vmatpush1.bf16.msra.mxu0 %v2500
      %2522 = vmatprep.subr.bf16.mxu0 0
      %2523 = vmatpush1.bf16.msra.mxu0 %v2501
      %2524 = vmatprep.subr.bf16.mxu0 0
      %2525 = vmatpush1.bf16.msra.mxu0 %v2502
      %2526 = vmatprep.subr.bf16.mxu0 0
      %2527 = vmatpush1.bf16.msra.mxu0 %v2503
      %2528 = vmatprep.subr.bf16.mxu0 0
      %2529 = vmatpush1.bf16.msra.mxu0 0
      %2530 = vmatprep.subr.bf16.mxu0 0
      %2531 = vmatpush1.bf16.msra.mxu0 0
      %2532 = vmatprep.subr.bf16.mxu0 0
      %2533 = vmatpush1.bf16.msra.mxu0 0
      %2534 = vmatprep.subr.bf16.mxu0 0
      %2535 = vmatpush1.bf16.msra.mxu0 0
      %2536 = vmatprep.subr.bf16.mxu0 0
      %2537 = vmatpush1.bf16.msra.mxu0 0
      %2538 = vmatprep.subr.bf16.mxu0 0
      %2539 = vmatpush1.bf16.msra.mxu0 0
      %2540 = vmatprep.subr.bf16.mxu0 0
      %2541 = vmatpush1.bf16.msra.mxu0 0
      %2542 = vmatprep.subr.bf16.mxu0 0
      %2543 = vmatpush1.bf16.msra.mxu0 0
      %2544 = vmatprep.mubr.bf16.mxu0 0
      %2545 = vmatmul.mubr.bf16.gmra.mrb[0].mxu0 %v1290
      %v2546 = vpop.f32.mrb[0].mxu0
      %v2547 = vadd.f32 0.0, %v2546
      %v2548 = vpop.f32.mrb[0].mxu0
      %v2549 = vpop.f32.mrb[0].mxu0
      %v2550 = vadd.f32 0.0, %v2549
      %v2551 = vpop.f32.mrb[0].mxu0
      %2552 = vmatprep.mubr.bf16.mxu0 0
      %2553 = vmatmul.mubr.bf16.gmra.mrb[0].mxu0 %v1291
      %v2554 = vpop.f32.mrb[0].mxu0
      %v2555 = vadd.f32 0.0, %v2554
      %v2556 = vpop.f32.mrb[0].mxu0
      %v2557 = vpop.f32.mrb[0].mxu0
      %v2558 = vadd.f32 0.0, %v2557
      %v2559 = vpop.f32.mrb[0].mxu0
      %2560 = vmatprep.mubr.bf16.mxu0 0
      %2561 = vmatmul.mubr.bf16.gmra.mrb[0].mxu0 %v1292
      %v2562 = vpop.f32.mrb[0].mxu0
      %v2563 = vadd.f32 0.0, %v2562
      %v2564 = vpop.f32.mrb[0].mxu0
      %v2565 = vpop.f32.mrb[0].mxu0
      %v2566 = vadd.f32 0.0, %v2565
      %v2567 = vpop.f32.mrb[0].mxu0
      %2568 = vmatprep.mubr.bf16.mxu0 0
      %2569 = vmatmul.mubr.bf16.gmra.mrb[0].mxu0 %v1293
      %v2570 = vpop.f32.mrb[0].mxu0
      %v2571 = vadd.f32 0.0, %v2570
      %v2572 = vpop.f32.mrb[0].mxu0
      %v2573 = vpop.f32.mrb[0].mxu0
      %v2574 = vadd.f32 0.0, %v2573
      %v2575 = vpop.f32.mrb[0].mxu0
      %2576 = vmatprep.mubr.bf16.mxu0 0
      %2577 = vmatmul.mubr.bf16.gmra.mrb[0].mxu0 %v1294
      %v2578 = vpop.f32.mrb[0].mxu0
      %v2579 = vadd.f32 0.0, %v2578
      %v2580 = vpop.f32.mrb[0].mxu0
      %v2581 = vpop.f32.mrb[0].mxu0
      %v2582 = vadd.f32 0.0, %v2581
      %v2583 = vpop.f32.mrb[0].mxu0
      %2584 = vmatprep.mubr.bf16.mxu0 0
      %2585 = vmatmul.mubr.bf16.gmra.mrb[0].mxu0 %v1295
      %v2586 = vpop.f32.mrb[0].mxu0
      %v2587 = vadd.f32 0.0, %v2586
      %v2588 = vpop.f32.mrb[0].mxu0
      %v2589 = vpop.f32.mrb[0].mxu0
      %v2590 = vadd.f32 0.0, %v2589
      %v2591 = vpop.f32.mrb[0].mxu0
      %2592 = vmatprep.mubr.bf16.mxu0 0
      %2593 = vmatmul.mubr.bf16.gmra.mrb[0].mxu0 %v1882
      %v2594 = vpop.f32.mrb[0].mxu0
      %v2595 = vadd.f32 0.0, %v2594
      %v2596 = vpop.f32.mrb[0].mxu0
      %v2597 = vpop.f32.mrb[0].mxu0
      %v2598 = vadd.f32 0.0, %v2597
      %v2599 = vpop.f32.mrb[0].mxu0
      %2600 = vmatprep.mubr.bf16.mxu0 0
      %2601 = vmatmul.mubr.bf16.gmra.mrb[0].mxu0 %v2462
      %v2602 = vpop.f32.mrb[0].mxu0
      %v2603 = vadd.f32 0.0, %v2602
      %v2604 = vpop.f32.mrb[0].mxu0
      %v2605 = vpop.f32.mrb[0].mxu0
      %v2606 = vadd.f32 0.0, %v2605
      %v2607 = vpop.f32.mrb[0].mxu0
      %2608 = vdwg.mxu0
      %v2609 = vadd.f32 %v2419, %v2547
      %v2610 = vadd.f32 %v2420, %v2550
      %v2611 = vadd.f32 %v2421, %v2555
      %v2612 = vadd.f32 %v2422, %v2558
      %v2613 = vadd.f32 %v2423, %v2563
      %v2614 = vadd.f32 %v2424, %v2566
      %v2615 = vadd.f32 %v2425, %v2571
      %v2616 = vadd.f32 %v2426, %v2574
      %v2617 = vadd.f32 %v2427, %v2579
      %v2618 = vadd.f32 %v2428, %v2582
      %v2619 = vadd.f32 %v2429, %v2587
      %v2620 = vadd.f32 %v2430, %v2590
      %v2621 = vadd.f32 %v2431, %v2595
      %v2622 = vadd.f32 %v2432, %v2598
      %v2623 = vadd.f32 %v2433, %v2603
      %v2624 = vadd.f32 %v2434, %v2606
      %v2625 = vld [vmem:[%s3] sm:$0x1]
      %v2627 = vlaneseq
      %v2628 = vshrl.u32 %v2627, 7
      %v2629 = vsub.s32 0, %v2628
      %v2630 = vrot.slane %v2625, %v2629
      %v2632 = vmul.f32 %v2609, %v2630
      %v2633 = vmul.f32 %v2610, %v2630
      %v2634 = vmul.f32 %v2611, %v2630
      %v2635 = vmul.f32 %v2612, %v2630
      %v2636 = vmul.f32 %v2613, %v2630
      %v2637 = vmul.f32 %v2614, %v2630
      %v2638 = vmul.f32 %v2615, %v2630
      %v2639 = vmul.f32 %v2616, %v2630
      %v2640 = vmul.f32 %v2617, %v2630
      %v2641 = vmul.f32 %v2618, %v2630
      %v2642 = vmul.f32 %v2619, %v2630
      %v2643 = vmul.f32 %v2620, %v2630
      %v2644 = vmul.f32 %v2621, %v2630
      %v2645 = vmul.f32 %v2622, %v2630
      %v2646 = vmul.f32 %v2623, %v2630
      %v2647 = vmul.f32 %v2624, %v2630
      %v2648 = vld [vmem:[%s4] sm:$0x1]
      %v2650 = vlaneseq
      %v2651 = vshrl.u32 %v2650, 7
      %v2652 = vsub.s32 0, %v2651
      %v2653 = vrot.slane %v2648, %v2652
      %v2655 = vadd.f32 %v2632, %v2653
      %v2656 = vadd.f32 %v2633, %v2653
      %v2657 = vadd.f32 %v2634, %v2653
      %v2658 = vadd.f32 %v2635, %v2653
      %v2659 = vadd.f32 %v2636, %v2653
      %v2660 = vadd.f32 %v2637, %v2653
      %v2661 = vadd.f32 %v2638, %v2653
      %v2662 = vadd.f32 %v2639, %v2653
      %v2663 = vadd.f32 %v2640, %v2653
      %v2664 = vadd.f32 %v2641, %v2653
      %v2665 = vadd.f32 %v2642, %v2653
      %v2666 = vadd.f32 %v2643, %v2653
      %v2667 = vadd.f32 %v2644, %v2653
      %v2668 = vadd.f32 %v2645, %v2653
      %v2669 = vadd.f32 %v2646, %v2653
      %v2670 = vadd.f32 %v2647, %v2653
      %v2671 = vmax.f32 %v2655, 0.0
      %v2672 = vmax.f32 %v2656, 0.0
      %v2673 = vmax.f32 %v2657, 0.0
      %v2674 = vmax.f32 %v2658, 0.0
      %v2675 = vmax.f32 %v2659, 0.0
      %v2676 = vmax.f32 %v2660, 0.0
      %v2677 = vmax.f32 %v2661, 0.0
      %v2678 = vmax.f32 %v2662, 0.0
      %v2679 = vmax.f32 %v2663, 0.0
      %v2680 = vmax.f32 %v2664, 0.0
      %v2681 = vmax.f32 %v2665, 0.0
      %v2682 = vmax.f32 %v2666, 0.0
      %v2683 = vmax.f32 %v2667, 0.0
      %v2684 = vmax.f32 %v2668, 0.0
      %v2685 = vmax.f32 %v2669, 0.0
      %v2686 = vmax.f32 %v2670, 0.0
      %v2687 = vpack.c.bf16 %v2672, %v2671
      %v2688 = vpack.c.bf16 %v2674, %v2673
      %v2689 = vpack.c.bf16 %v2676, %v2675
      %v2690 = vpack.c.bf16 %v2678, %v2677
      %v2691 = vpack.c.bf16 %v2680, %v2679
      %v2692 = vpack.c.bf16 %v2682, %v2681
      %v2693 = vpack.c.bf16 %v2684, %v2683
      %v2694 = vpack.c.bf16 %v2686, %v2685
      %v2695 = vld [vmem:[%s2] sm:$0xf]
      %v2696 = vld [vmem:[%s2 + $0x4] sm:$0xf]
      %v2697 = vld [vmem:[%s2 + $0x8] sm:$0xf]
      %v2698 = vld [vmem:[%s2 + $0xc] sm:$0xf]
      %v2699 = vld [vmem:[%s2 + $0x10] sm:$0xf]
      %v2700 = vld [vmem:[%s2 + $0x14] sm:$0xf]
      %v2701 = vld [vmem:[%s2 + $0x18] sm:$0xf]
      %v2702 = vld [vmem:[%s2 + $0x1c] sm:$0xf]
      %v2703 = vld [vmem:[%s2 + $0x20] sm:$0xf]
      %v2704 = vld [vmem:[%s2 + $0x24] sm:$0xf]
      %v2705 = vld [vmem:[%s2 + $0x28] sm:$0xf]
      %v2706 = vld [vmem:[%s2 + $0x2c] sm:$0xf]
      %v2707 = vld [vmem:[%s2 + $0x30] sm:$0xf]
      %v2708 = vld [vmem:[%s2 + $0x34] sm:$0xf]
      %v2709 = vld [vmem:[%s2 + $0x38] sm:$0xf]
      %v2710 = vld [vmem:[%s2 + $0x3c] sm:$0xf]
      %v2727 = vunpack.c.l.b16 %v2695
      %v2728 = vunpack.c.l.b16 %v2696
      %v2729 = vunpack.c.l.b16 %v2697
      %v2730 = vunpack.c.l.b16 %v2698
      %v2731 = vunpack.c.l.b16 %v2699
      %v2732 = vunpack.c.l.b16 %v2700
      %v2733 = vunpack.c.l.b16 %v2701
      %v2734 = vunpack.c.l.b16 %v2702
      %v2735 = vunpack.c.l.b16 %v2703
      %v2736 = vunpack.c.l.b16 %v2704
      %v2737 = vunpack.c.l.b16 %v2705
      %v2738 = vunpack.c.l.b16 %v2706
      %v2739 = vunpack.c.l.b16 %v2707
      %v2740 = vunpack.c.l.b16 %v2708
      %v2741 = vunpack.c.l.b16 %v2709
      %v2742 = vunpack.c.l.b16 %v2710
      %v2743 = vpack.c.b16 %v2728, %v2727
      %v2744 = vpack.c.b16 %v2730, %v2729
      %v2745 = vpack.c.b16 %v2732, %v2731
      %v2746 = vpack.c.b16 %v2734, %v2733
      %v2747 = vpack.c.b16 %v2736, %v2735
      %v2748 = vpack.c.b16 %v2738, %v2737
      %v2749 = vpack.c.b16 %v2740, %v2739
      %v2750 = vpack.c.b16 %v2742, %v2741
      %2759 = vmatprep.subr.bf16.mxu0 0
      %2760 = vmatpush1.bf16.msra.mxu0 %v2743
      %2761 = vmatprep.subr.bf16.mxu0 0
      %2762 = vmatpush1.bf16.msra.mxu0 %v2744
      %2763 = vmatprep.subr.bf16.mxu0 0
      %2764 = vmatpush1.bf16.msra.mxu0 %v2745
      %2765 = vmatprep.subr.bf16.mxu0 0
      %2766 = vmatpush1.bf16.msra.mxu0 %v2746
      %2767 = vmatprep.subr.bf16.mxu0 0
      %2768 = vmatpush1.bf16.msra.mxu0 %v2747
      %2769 = vmatprep.subr.bf16.mxu0 0
      %2770 = vmatpush1.bf16.msra.mxu0 %v2748
      %2771 = vmatprep.subr.bf16.mxu0 0
      %2772 = vmatpush1.bf16.msra.mxu0 %v2749
      %2773 = vmatprep.subr.bf16.mxu0 0
      %2774 = vmatpush1.bf16.msra.mxu0 %v2750
      %2775 = vmatprep.subr.bf16.mxu0 0
      %2776 = vmatpush1.bf16.msra.mxu0 0
      %2777 = vmatprep.subr.bf16.mxu0 0
      %2778 = vmatpush1.bf16.msra.mxu0 0
      %2779 = vmatprep.subr.bf16.mxu0 0
      %2780 = vmatpush1.bf16.msra.mxu0 0
      %2781 = vmatprep.subr.bf16.mxu0 0
      %2782 = vmatpush1.bf16.msra.mxu0 0
      %2783 = vmatprep.subr.bf16.mxu0 0
      %2784 = vmatpush1.bf16.msra.mxu0 0
      %2785 = vmatprep.subr.bf16.mxu0 0
      %2786 = vmatpush1.bf16.msra.mxu0 0
      %2787 = vmatprep.subr.bf16.mxu0 0
      %2788 = vmatpush1.bf16.msra.mxu0 0
      %2789 = vmatprep.subr.bf16.mxu0 0
      %2790 = vmatpush1.bf16.msra.mxu0 0
      %2791 = vmatprep.mubr.bf16.mxu0 0
      %2792 = vmatmul.mubr.bf16.gmra.mrb[0].mxu0 %v2687
      %v2793 = vpop.f32.mrb[0].mxu0
      %v2794 = vadd.f32 0.0, %v2793
      %v2795 = vpop.f32.mrb[0].mxu0
      %v2796 = vpop.f32.mrb[0].mxu0
      %v2797 = vadd.f32 0.0, %v2796
      %v2798 = vpop.f32.mrb[0].mxu0
      %2799 = vmatprep.mubr.bf16.mxu0 0
      %2800 = vmatmul.mubr.bf16.gmra.mrb[0].mxu0 %v2688
      %v2801 = vpop.f32.mrb[0].mxu0
      %v2802 = vadd.f32 0.0, %v2801
      %v2803 = vpop.f32.mrb[0].mxu0
      %v2804 = vpop.f32.mrb[0].mxu0
      %v2805 = vadd.f32 0.0, %v2804
      %v2806 = vpop.f32.mrb[0].mxu0
      %2807 = vmatprep.mubr.bf16.mxu0 0
      %2808 = vmatmul.mubr.bf16.gmra.mrb[0].mxu0 %v2689
      %v2809 = vpop.f32.mrb[0].mxu0
      %v2810 = vadd.f32 0.0, %v2809
      %v2811 = vpop.f32.mrb[0].mxu0
      %v2812 = vpop.f32.mrb[0].mxu0
      %v2813 = vadd.f32 0.0, %v2812
      %v2814 = vpop.f32.mrb[0].mxu0
      %2815 = vmatprep.mubr.bf16.mxu0 0
      %2816 = vmatmul.mubr.bf16.gmra.mrb[0].mxu0 %v2690
      %v2817 = vpop.f32.mrb[0].mxu0
      %v2818 = vadd.f32 0.0, %v2817
      %v2819 = vpop.f32.mrb[0].mxu0
      %v2820 = vpop.f32.mrb[0].mxu0
      %v2821 = vadd.f32 0.0, %v2820
      %v2822 = vpop.f32.mrb[0].mxu0
      %2823 = vmatprep.mubr.bf16.mxu0 0
      %2824 = vmatmul.mubr.bf16.gmra.mrb[0].mxu0 %v2691
      %v2825 = vpop.f32.mrb[0].mxu0
      %v2826 = vadd.f32 0.0, %v2825
      %v2827 = vpop.f32.mrb[0].mxu0
      %v2828 = vpop.f32.mrb[0].mxu0
      %v2829 = vadd.f32 0.0, %v2828
      %v2830 = vpop.f32.mrb[0].mxu0
      %2831 = vmatprep.mubr.bf16.mxu0 0
      %2832 = vmatmul.mubr.bf16.gmra.mrb[0].mxu0 %v2692
      %v2833 = vpop.f32.mrb[0].mxu0
      %v2834 = vadd.f32 0.0, %v2833
      %v2835 = vpop.f32.mrb[0].mxu0
      %v2836 = vpop.f32.mrb[0].mxu0
      %v2837 = vadd.f32 0.0, %v2836
      %v2838 = vpop.f32.mrb[0].mxu0
      %2839 = vmatprep.mubr.bf16.mxu0 0
      %2840 = vmatmul.mubr.bf16.gmra.mrb[0].mxu0 %v2693
      %v2841 = vpop.f32.mrb[0].mxu0
      %v2842 = vadd.f32 0.0, %v2841
      %v2843 = vpop.f32.mrb[0].mxu0
      %v2844 = vpop.f32.mrb[0].mxu0
      %v2845 = vadd.f32 0.0, %v2844
      %v2846 = vpop.f32.mrb[0].mxu0
      %2847 = vmatprep.mubr.bf16.mxu0 0
      %2848 = vmatmul.mubr.bf16.gmra.mrb[0].mxu0 %v2694
      %v2849 = vpop.f32.mrb[0].mxu0
      %v2850 = vadd.f32 0.0, %v2849
      %v2851 = vpop.f32.mrb[0].mxu0
      %v2852 = vpop.f32.mrb[0].mxu0
      %v2853 = vadd.f32 0.0, %v2852
      %v2854 = vpop.f32.mrb[0].mxu0
      %2855 = vdwg.mxu0
      %v2856 = vld [vmem:[%s5] sm:$0x1]
      %v2858 = vlaneseq
      %v2859 = vshrl.u32 %v2858, 7
      %v2860 = vsub.s32 0, %v2859
      %v2861 = vrot.slane %v2856, %v2860
      %v2863 = vmul.f32 %v2794, %v2861
      %v2864 = vmul.f32 %v2797, %v2861
      %v2865 = vmul.f32 %v2802, %v2861
      %v2866 = vmul.f32 %v2805, %v2861
      %v2867 = vmul.f32 %v2810, %v2861
      %v2868 = vmul.f32 %v2813, %v2861
      %v2869 = vmul.f32 %v2818, %v2861
      %v2870 = vmul.f32 %v2821, %v2861
      %v2871 = vmul.f32 %v2826, %v2861
      %v2872 = vmul.f32 %v2829, %v2861
      %v2873 = vmul.f32 %v2834, %v2861
      %v2874 = vmul.f32 %v2837, %v2861
      %v2875 = vmul.f32 %v2842, %v2861
      %v2876 = vmul.f32 %v2845, %v2861
      %v2877 = vmul.f32 %v2850, %v2861
      %v2878 = vmul.f32 %v2853, %v2861
      %v2879 = vld [vmem:[%s6] sm:$0x1]
      %v2881 = vlaneseq
      %v2882 = vshrl.u32 %v2881, 7
      %v2883 = vsub.s32 0, %v2882
      %v2884 = vrot.slane %v2879, %v2883
      %v2886 = vadd.f32 %v2863, %v2884
      %v2887 = vadd.f32 %v2864, %v2884
      %v2888 = vadd.f32 %v2865, %v2884
      %v2889 = vadd.f32 %v2866, %v2884
      %v2890 = vadd.f32 %v2867, %v2884
      %v2891 = vadd.f32 %v2868, %v2884
      %v2892 = vadd.f32 %v2869, %v2884
      %v2893 = vadd.f32 %v2870, %v2884
      %v2894 = vadd.f32 %v2871, %v2884
      %v2895 = vadd.f32 %v2872, %v2884
      %v2896 = vadd.f32 %v2873, %v2884
      %v2897 = vadd.f32 %v2874, %v2884
      %v2898 = vadd.f32 %v2875, %v2884
      %v2899 = vadd.f32 %v2876, %v2884
      %v2900 = vadd.f32 %v2877, %v2884
      %v2901 = vadd.f32 %v2878, %v2884
      %vm2926 = vcmask 1046528
      %v2927 = vrot.slane %v311, 1
      %v2928 = vrot.slane %v312, 1
      %v2929 = vsel %vm2926, %v2927, %v2928
      %v2930 = vrot.slane %v313, 1
      %v2931 = vsel %vm2926, %v2928, %v2930
      %v2932 = vrot.slane %v314, 1
      %v2933 = vrot.slane %v315, 1
      %v2934 = vsel %vm2926, %v2932, %v2933
      %v2935 = vrot.slane %v316, 1
      %v2936 = vsel %vm2926, %v2933, %v2935
      %v2937 = vrot.slane %v317, 1
      %v2938 = vrot.slane %v318, 1
      %v2939 = vsel %vm2926, %v2937, %v2938
      %v2940 = vrot.slane %v319, 1
      %v2941 = vsel %vm2926, %v2938, %v2940
      %v2942 = vrot.slane %v320, 1
      %v2943 = vrot.slane %v321, 1
      %v2944 = vsel %vm2926, %v2942, %v2943
      %v2945 = vrot.slane %v322, 1
      %v2946 = vsel %vm2926, %v2943, %v2945
      %v2947 = vrot.slane %v323, 1
      %v2948 = vrot.slane %v324, 1
      %v2949 = vsel %vm2926, %v2947, %v2948
      %v2950 = vrot.slane %v325, 1
      %v2951 = vsel %vm2926, %v2948, %v2950
      %v2952 = vrot.slane %v326, 1
      %v2953 = vrot.slane %v327, 1
      %v2954 = vsel %vm2926, %v2952, %v2953
      %v2955 = vrot.slane %v328, 1
      %v2956 = vsel %vm2926, %v2953, %v2955
      %v2957 = vrot.slane %v329, 1
      %v2958 = vrot.slane %v330, 1
      %v2959 = vsel %vm2926, %v2957, %v2958
      %v2960 = vrot.slane %v331, 1
      %v2961 = vsel %vm2926, %v2958, %v2960
      %v2962 = vrot.slane %v332, 1
      %v2963 = vrot.slane %v333, 1
      %v2964 = vsel %vm2926, %v2962, %v2963
      %v2965 = vrot.slane %v334, 1
      %v2966 = vsel %vm2926, %v2963, %v2965
      %v2983 = vadd.f32 %v2929, %v2886
      %v2984 = vadd.f32 %v2931, %v2887
      %v2985 = vadd.f32 %v2934, %v2888
      %v2986 = vadd.f32 %v2936, %v2889
      %v2987 = vadd.f32 %v2939, %v2890
      %v2988 = vadd.f32 %v2941, %v2891
      %v2989 = vadd.f32 %v2944, %v2892
      %v2990 = vadd.f32 %v2946, %v2893
      %v2991 = vadd.f32 %v2949, %v2894
      %v2992 = vadd.f32 %v2951, %v2895
      %v2993 = vadd.f32 %v2954, %v2896
      %v2994 = vadd.f32 %v2956, %v2897
      %v2995 = vadd.f32 %v2959, %v2898
      %v2996 = vadd.f32 %v2961, %v2899
      %v2997 = vadd.f32 %v2964, %v2900
      %v2998 = vadd.f32 %v2966, %v2901
      %vm2999 = vcmask 31744
      %3000 = vst.msk [vmem:[%s302] sm:$0xff] %vm2999, %v2983
      %3001 = vst.msk [vmem:[%s302 + $0x8] sm:$0xff] %vm2999, %v2984
      %3002 = vst.msk [vmem:[%s302 + $0x10] sm:$0xff] %vm2999, %v2985
      %3003 = vst.msk [vmem:[%s302 + $0x18] sm:$0xff] %vm2999, %v2986
      %3004 = vst.msk [vmem:[%s302 + $0x20] sm:$0xff] %vm2999, %v2987
      %3005 = vst.msk [vmem:[%s302 + $0x28] sm:$0xff] %vm2999, %v2988
      %3006 = vst.msk [vmem:[%s302 + $0x30] sm:$0xff] %vm2999, %v2989
      %3007 = vst.msk [vmem:[%s302 + $0x38] sm:$0xff] %vm2999, %v2990
      %3008 = vst.msk [vmem:[%s302 + $0x40] sm:$0xff] %vm2999, %v2991
      %3009 = vst.msk [vmem:[%s302 + $0x48] sm:$0xff] %vm2999, %v2992
      %3010 = vst.msk [vmem:[%s302 + $0x50] sm:$0xff] %vm2999, %v2993
      %3011 = vst.msk [vmem:[%s302 + $0x58] sm:$0xff] %vm2999, %v2994
      %3012 = vst.msk [vmem:[%s302 + $0x60] sm:$0xff] %vm2999, %v2995
      %3013 = vst.msk [vmem:[%s302 + $0x68] sm:$0xff] %vm2999, %v2996
      %3014 = vst.msk [vmem:[%s302 + $0x70] sm:$0xff] %vm2999, %v2997
      %3015 = vst.msk [vmem:[%s302 + $0x78] sm:$0xff] %vm2999, %v2998
      %s3016 = smul.u32 8, %s23
      %p3017 = scmp.lt.s32.totalorder %s22, 1
      %s3018 = scalar_select %p3017, %s22, 1
      %p3019 = scmp.lt.s32.totalorder %s3016, 15
      %s3020 = scalar_select %p3019, %s3016, 15
      %s3021 = smul.addr %s3020, 2
      %s3022 = smul.addr %s3018, 32
      %s3023 = sadd.s32 %s3021, %s3022
      %s3024 = smul.addr %s3023, 8
      %s3025 = scalar_lea.vmem %s7, %s3024
      // Predicated region
      $region49: #{residual_forward.1} parent=47 // pred_check
        %p3026 = pneg %p202
      $region50: #{residual_forward.1} parent=47 // pred_check_branch
        %3028 = sbr.rel (%p3026) target = $region52
      $region51: #{residual_forward.1} parent=47 // pred_region
        %s3029 = smul.u32 8, %s23
      $region52: #{residual_forward.1} parent=47 // pred_fallthru
        _
    $region48: #{residual_forward.1} parent=5 // pred_fallthru
      _
    %p3030 = scmp.le.s32.totalorder 2, %s13
    // Predicated region
    $region53: #{residual_forward.1} parent=5 // pred_check
      %p3031 = pneg %p3030
    $region54: #{residual_forward.1} parent=5 // pred_check_branch
      %3033 = sbr.rel (%p3031) target = $region56
    $region55: #{residual_forward.1} parent=5 // pred_region
      %s3034 = ssub.s32 %s13, 2
      // Predicated region
      $region57: #{residual_forward.1} parent=55 // pred_check
        %p3035 = pneg %p208
      $region58: #{residual_forward.1} parent=55 // pred_check_branch
        %3037 = sbr.rel (%p3035) target = $region60
      $region59: #{residual_forward.1} parent=55 // pred_region
        %s3038 = smul.u32 8, %s25
        %p3039 = scmp.lt.s32.totalorder %s24, 1
        %s3040 = scalar_select %p3039, %s24, 1
        %p3041 = scmp.lt.s32.totalorder %s3038, 15
        %s3042 = scalar_select %p3041, %s3038, 15
        %s3043 = smul.addr %s3042, 2
        %s3044 = smul.addr %s3040, 32
        %s3045 = sadd.s32 %s3043, %s3044
        %s3046 = smul.addr %s3045, 8
        %s3047 = scalar_lea.vmem %s7, %s3046
      $region60: #{residual_forward.1} parent=55 // pred_fallthru
        _
    $region56: #{residual_forward.1} parent=5 // pred_fallthru
      _
  $region6: #{residual_forward.1} parent=0 // loop_footer
    %s17 = sadd.s32 1, %s13
  $region7: #{residual_forward.1} parent=0 // loop_footer_branch
    %12 = sbr.rel target = $region3
  $region8: #{residual_forward.1} parent=0 // loop_exit
    _

</llo_original>
